<compile_context>
chip_gen: v6e
topology: v6e:2x2x1
jax: 0.10.0
libtpu: 0.0.40
codegen_flags: <defaults>
</compile_context>

<pallas_src>
import math

import jax
import jax.numpy as jnp
from jax.experimental import pallas as pl
from jax.experimental.pallas import tpu as pltpu

# Logical (PyTorch) dims.
D_IN = 16
H1 = 500
H2 = 1000

# Lane/MXU-friendly padded dims.
H1_P = 512
H2_P = 1024


def _round_up(x, m):
    return (x + m - 1) // m * m


def mlp_kernel(x_ref, w1_ref, b1_ref, w2_ref, b2_ref, w3_ref, b3_ref, o_ref):
    # fc1 + ReLU: bf16 MXU operands, f32 accumulation, f32 epilogue.
    x = x_ref[...].astype(jnp.bfloat16)
    h1 = jnp.dot(x, w1_ref[...], preferred_element_type=jnp.float32)
    h1 = jnp.maximum(h1 + b1_ref[...], 0.0)
    # fc2 + ReLU
    h2 = jnp.dot(h1.astype(jnp.bfloat16), w2_ref[...],
                 preferred_element_type=jnp.float32)
    h2 = jnp.maximum(h2 + b2_ref[...], 0.0)
    # fc3 (no activation)
    out = jnp.dot(h2.astype(jnp.bfloat16), w3_ref[...],
                  preferred_element_type=jnp.float32)
    o_ref[...] = (out + b3_ref[...]).astype(o_ref.dtype)


def model_fit_forward(x, padded_params, n_out):
    """x: (B, 16) float32. padded_params: output of prepare_params. Returns (B, n_out)."""
    w1, b1 = padded_params["w1"], padded_params["b1"]
    w2, b2 = padded_params["w2"], padded_params["b2"]
    w3, b3 = padded_params["w3"], padded_params["b3"]

    B = x.shape[0]
    n_pad = w3.shape[1]  # padded output width (multiple of 128)

    # Batch tile: big enough to feed the MXU M dimension when B is large, rounded
    # to a multiple of 8 (sublane) when B is small.  Pad the batch so TB | B_pad.
    TB = 256 if B >= 256 else max(8, _round_up(B, 8))
    B_pad = _round_up(B, TB)
    if B_pad != B:
        x = jnp.pad(x, ((0, B_pad - B), (0, 0)))
    grid = (B_pad // TB,)

    # Weights/biases: full-array block + constant index_map -> DMA'd once, stay
    # VMEM-resident across all batch steps (~1.3 MB bf16 weights + ~7 KB f32 bias).
    def resident(a):
        return pl.BlockSpec(a.shape, lambda i: (0,) * a.ndim)

    flops = 2 * B_pad * (D_IN * H1_P + H1_P * H2_P + H2_P * n_pad)
    bytes_accessed = int(
        sum(int(a.size) * a.dtype.itemsize for a in (w1, b1, w2, b2, w3, b3))
        + int(x.size) * x.dtype.itemsize
        + B_pad * n_pad * 4
    )

    out = pl.pallas_call(
        mlp_kernel,
        out_shape=jax.ShapeDtypeStruct((B_pad, n_pad), jnp.float32),
        grid=grid,
        in_specs=[
            pl.BlockSpec((TB, D_IN), lambda i: (i, 0)),   # x: tiled over batch
            resident(w1), resident(b1),
            resident(w2), resident(b2),
            resident(w3), resident(b3),
        ],
        out_specs=pl.BlockSpec((TB, n_pad), lambda i: (i, 0)),
        compiler_params=pltpu.CompilerParams(
            # Batch steps are independent -> sharded across the 2 TCs on v7x.
            dimension_semantics=("parallel",),
            # VMEM budget: ~1.3 MB resident weights + 2x double-buffered
            # TB*(16+n_pad)*4B activations + ~1.6 MB f32 intermediates at TB=256.
            # Comfortably under the 32 MiB scoped default on v5e/v6e/v7x.
            vmem_limit_bytes=32 * 1024 * 1024,
        ),
        cost_estimate=pl.CostEstimate(
            flops=flops, transcendentals=0, bytes_accessed=bytes_accessed),
    )(x, w1, b1, w2, b2, w3, b3)

    return out[:B, :n_out]


def init_params(key, N=16):
    """Deterministic init matching PyTorch nn.Linear default (uniform +/- 1/sqrt(fan_in))."""
    dims = [(D_IN, H1), (H1, H2), (H2, N)]
    params = {}
    keys = jax.random.split(key, 2 * len(dims))
    for i, (fan_in, fan_out) in enumerate(dims):
        bound = 1.0 / math.sqrt(fan_in)
        params[f"w{i+1}"] = jax.random.uniform(
            keys[2 * i], (fan_in, fan_out), minval=-bound, maxval=bound,
            dtype=jnp.float32)
        params[f"b{i+1}"] = jax.random.uniform(
            keys[2 * i + 1], (1, fan_out), minval=-bound, maxval=bound,
            dtype=jnp.float32)
    return params


def prepare_params(params, N):
    """Zero-pad to lane-dense shapes (512/1024/round_up(N,128)) and cast weights to bf16.

    Zero padding keeps the math exact: padded hidden columns are ReLU(0+0)=0 and the
    corresponding padded weight rows are 0, so they contribute nothing downstream.
    """
    n_pad = max(128, _round_up(N, 128))
    w_shapes = {"w1": (D_IN, H1_P), "w2": (H1_P, H2_P), "w3": (H2_P, n_pad)}
    b_shapes = {"b1": (1, H1_P), "b2": (1, H2_P), "b3": (1, n_pad)}
    pp = {}
    for k, tgt in w_shapes.items():
        w = params[k]
        w = jnp.pad(w, ((0, tgt[0] - w.shape[0]), (0, tgt[1] - w.shape[1])))
        pp[k] = w.astype(jnp.bfloat16)
    for k, tgt in b_shapes.items():
        b = params[k]
        pp[k] = jnp.pad(b, ((0, 0), (0, tgt[1] - b.shape[1]))).astype(jnp.float32)
    return pp


def reference_forward_f32(x, params):
    h1 = jnp.maximum(x @ params["w1"] + params["b1"], 0.0)
    h2 = jnp.maximum(h1 @ params["w2"] + params["b2"], 0.0)
    return h2 @ params["w3"] + params["b3"]


def reference_forward_bf16(x, params):
    """Same precision path as the kernel (bf16 MXU operands, f32 accumulation)."""
    bf = jnp.bfloat16
    h1 = jnp.dot(x.astype(bf), params["w1"].astype(bf),
                 preferred_element_type=jnp.float32) + params["b1"]
    h1 = jnp.maximum(h1, 0.0)
    h2 = jnp.dot(h1.astype(bf), params["w2"].astype(bf),
                 preferred_element_type=jnp.float32) + params["b2"]
    h2 = jnp.maximum(h2, 0.0)
    return jnp.dot(h2.astype(bf), params["w3"].astype(bf),
                   preferred_element_type=jnp.float32) + params["b3"]


if __name__ == "__main__":
    key = jax.random.PRNGKey(0)
    k_x, k_p = jax.random.split(key)

    B, N = 8, 16
    x = jax.random.normal(k_x, (B, D_IN), dtype=jnp.float32)
    params = init_params(k_p, N=N)
    padded_params = prepare_params(params, N)

    out = model_fit_forward(x, padded_params, N)
    out = jax.block_until_ready(out)
    assert out.shape == (B, N), out.shape

    # Tight check against a JAX reference that follows the same bf16-operand /
    # f32-accumulate precision path (validates padding + kernel logic).
    ref_bf16 = reference_forward_bf16(x, params)
    assert jnp.allclose(out, ref_bf16, atol=2e-3, rtol=2e-3), "mismatch vs bf16 reference"

    # Loose sanity check against the pure-f32 PyTorch-equivalent math.
    ref_f32 = reference_forward_f32(x, params)
    assert jnp.allclose(out, ref_f32, atol=5e-2, rtol=5e-2), "mismatch vs f32 reference"

    print("KERNEL_OK")
</pallas_src>

<mosaic_0001>
module attributes {stable_mosaic.version = 11 : i64} {
  func.func @mlp_kernel(%arg0: i32, %arg1: memref<8x16xf32, #tpu.memory_space<vmem>>, %arg2: memref<16x512xbf16, #tpu.memory_space<vmem>>, %arg3: memref<1x512xf32, #tpu.memory_space<vmem>>, %arg4: memref<512x1024xbf16, #tpu.memory_space<vmem>>, %arg5: memref<1x1024xf32, #tpu.memory_space<vmem>>, %arg6: memref<1024x128xbf16, #tpu.memory_space<vmem>>, %arg7: memref<1x128xf32, #tpu.memory_space<vmem>>, %arg8: memref<8x128xf32, #tpu.memory_space<vmem>>) attributes {dimension_semantics = [#tpu.dimension_semantics<parallel>], iteration_bounds = array<i64: 1>, scalar_prefetch = 0 : i64, scratch_operands = 0 : i64, tpu.core_type = #tpu.core_type<tc>, window_params = [{transform_indices = @transform_0, window_bounds = array<i64: 8, 16>}, {pipeline_mode = #tpu.pipeline_mode<synchronous>, transform_indices = @transform_1, window_bounds = array<i64: 16, 512>}, {pipeline_mode = #tpu.pipeline_mode<synchronous>, transform_indices = @transform_2, window_bounds = array<i64: 1, 512>}, {pipeline_mode = #tpu.pipeline_mode<synchronous>, transform_indices = @transform_3, window_bounds = array<i64: 512, 1024>}, {pipeline_mode = #tpu.pipeline_mode<synchronous>, transform_indices = @transform_4, window_bounds = array<i64: 1, 1024>}, {pipeline_mode = #tpu.pipeline_mode<synchronous>, transform_indices = @transform_5, window_bounds = array<i64: 1024, 128>}, {pipeline_mode = #tpu.pipeline_mode<synchronous>, transform_indices = @transform_6, window_bounds = array<i64: 1, 128>}, {transform_indices = @transform_7, window_bounds = array<i64: 8, 128>}]} {
    %c0 = arith.constant 0 : index
    %c0_0 = arith.constant 0 : index
    %0 = vector.load %arg1[%c0, %c0_0] : memref<8x16xf32, #tpu.memory_space<vmem>>, vector<8x16xf32>
    %1 = arith.truncf %0 : vector<8x16xf32> to vector<8x16xbf16>
    %c0_1 = arith.constant 0 : index
    %c0_2 = arith.constant 0 : index
    %2 = vector.load %arg2[%c0_1, %c0_2] : memref<16x512xbf16, #tpu.memory_space<vmem>>, vector<16x512xbf16>
    %cst = arith.constant dense<0.000000e+00> : vector<8x512xf32>
    %3 = tpu.matmul %1, %2, %cst {dimension_numbers = #tpu.dot_dimension_numbers<[1], [0], [0], [1], [0, 0, 1, 1], [], []>} : vector<8x16xbf16>, vector<16x512xbf16>, vector<8x512xf32> -> vector<8x512xf32>
    %c0_3 = arith.constant 0 : index
    %c0_4 = arith.constant 0 : index
    %4 = vector.load %arg3[%c0_3, %c0_4] : memref<1x512xf32, #tpu.memory_space<vmem>>, vector<1x512xf32>
    %5 = vector.broadcast %4 : vector<1x512xf32> to vector<8x512xf32>
    %6 = arith.addf %3, %5 : vector<8x512xf32>
    %cst_5 = arith.constant 0.000000e+00 : f32
    %7 = vector.broadcast %cst_5 : f32 to vector<8x512xf32>
    %8 = arith.maximumf %6, %7 : vector<8x512xf32>
    %9 = arith.truncf %8 : vector<8x512xf32> to vector<8x512xbf16>
    %c0_6 = arith.constant 0 : index
    %c0_7 = arith.constant 0 : index
    %10 = vector.load %arg4[%c0_6, %c0_7] : memref<512x1024xbf16, #tpu.memory_space<vmem>>, vector<512x1024xbf16>
    %cst_8 = arith.constant dense<0.000000e+00> : vector<8x1024xf32>
    %11 = tpu.matmul %9, %10, %cst_8 {dimension_numbers = #tpu.dot_dimension_numbers<[1], [0], [0], [1], [0, 0, 1, 1], [], []>} : vector<8x512xbf16>, vector<512x1024xbf16>, vector<8x1024xf32> -> vector<8x1024xf32>
    %c0_9 = arith.constant 0 : index
    %c0_10 = arith.constant 0 : index
    %12 = vector.load %arg5[%c0_9, %c0_10] : memref<1x1024xf32, #tpu.memory_space<vmem>>, vector<1x1024xf32>
    %13 = vector.broadcast %12 : vector<1x1024xf32> to vector<8x1024xf32>
    %14 = arith.addf %11, %13 : vector<8x1024xf32>
    %cst_11 = arith.constant 0.000000e+00 : f32
    %15 = vector.broadcast %cst_11 : f32 to vector<8x1024xf32>
    %16 = arith.maximumf %14, %15 : vector<8x1024xf32>
    %17 = arith.truncf %16 : vector<8x1024xf32> to vector<8x1024xbf16>
    %c0_12 = arith.constant 0 : index
    %c0_13 = arith.constant 0 : index
    %18 = vector.load %arg6[%c0_12, %c0_13] : memref<1024x128xbf16, #tpu.memory_space<vmem>>, vector<1024x128xbf16>
    %cst_14 = arith.constant dense<0.000000e+00> : vector<8x128xf32>
    %19 = tpu.matmul %17, %18, %cst_14 {dimension_numbers = #tpu.dot_dimension_numbers<[1], [0], [0], [1], [0, 0, 1, 1], [], []>} : vector<8x1024xbf16>, vector<1024x128xbf16>, vector<8x128xf32> -> vector<8x128xf32>
    %c0_15 = arith.constant 0 : index
    %c0_16 = arith.constant 0 : index
    %20 = vector.load %arg7[%c0_15, %c0_16] : memref<1x128xf32, #tpu.memory_space<vmem>>, vector<1x128xf32>
    %21 = vector.broadcast %20 : vector<1x128xf32> to vector<8x128xf32>
    %22 = arith.addf %19, %21 : vector<8x128xf32>
    %c0_17 = arith.constant 0 : index
    %c0_18 = arith.constant 0 : index
    %23 = vector.load %arg8[%c0_17, %c0_18] : memref<8x128xf32, #tpu.memory_space<vmem>>, vector<8x128xf32>
    tpu.vector_store %arg8[%c0_17, %c0_18], %22 {strides = array<i32>} : memref<8x128xf32, #tpu.memory_space<vmem>>, vector<8x128xf32>,
    return
  }
  func.func @transform_0(%arg0: i32) -> (i32, i32) {
    %c0_i32 = arith.constant 0 : i32
    %c0_i32_0 = arith.constant 0 : i32
    return %arg0, %c0_i32 : i32, i32
  }
  func.func @transform_1(%arg0: i32) -> (i32, i32) {
    %c0_i32 = arith.constant 0 : i32
    %c0_i32_0 = arith.constant 0 : i32
    %c0_i32_1 = arith.constant 0 : i32
    return %c0_i32, %c0_i32_0 : i32, i32
  }
  func.func @transform_2(%arg0: i32) -> (i32, i32) {
    %c0_i32 = arith.constant 0 : i32
    %c0_i32_0 = arith.constant 0 : i32
    %c0_i32_1 = arith.constant 0 : i32
    return %c0_i32, %c0_i32_0 : i32, i32
  }
  func.func @transform_3(%arg0: i32) -> (i32, i32) {
    %c0_i32 = arith.constant 0 : i32
    %c0_i32_0 = arith.constant 0 : i32
    %c0_i32_1 = arith.constant 0 : i32
    return %c0_i32, %c0_i32_0 : i32, i32
  }
  func.func @transform_4(%arg0: i32) -> (i32, i32) {
    %c0_i32 = arith.constant 0 : i32
    %c0_i32_0 = arith.constant 0 : i32
    %c0_i32_1 = arith.constant 0 : i32
    return %c0_i32, %c0_i32_0 : i32, i32
  }
  func.func @transform_5(%arg0: i32) -> (i32, i32) {
    %c0_i32 = arith.constant 0 : i32
    %c0_i32_0 = arith.constant 0 : i32
    %c0_i32_1 = arith.constant 0 : i32
    return %c0_i32, %c0_i32_0 : i32, i32
  }
  func.func @transform_6(%arg0: i32) -> (i32, i32) {
    %c0_i32 = arith.constant 0 : i32
    %c0_i32_0 = arith.constant 0 : i32
    %c0_i32_1 = arith.constant 0 : i32
    return %c0_i32, %c0_i32_0 : i32, i32
  }
  func.func @transform_7(%arg0: i32) -> (i32, i32) {
    %c0_i32 = arith.constant 0 : i32
    %c0_i32_0 = arith.constant 0 : i32
    return %arg0, %c0_i32 : i32, i32
  }
}

</mosaic_0001>

<llo_original>
// kernel: tpu_custom_call.1
$region0: #{tpu_custom_call.1}
  #allocation0 [shape = 'u32[]', space=smem, size = 0x4, offset = 0x4, fixed_abs, tag = 'smem constant byte address 0x4 - core index']
  #allocation1 [shape = 'u32[144,128]{1,0:T(1,128)}', space=vmem, size = 0x12000, scoped, tag = 'internal scratch']
  %s0 = inlined_call_operand.hbm [shape: f32[8,16], index: 0, kind: input, shape index: {}]
  %s1 = inlined_call_operand.hbm [shape: bf16[16,512], index: 1, kind: input, shape index: {}]
  %s2 = inlined_call_operand.hbm [shape: f32[1,512], index: 2, kind: input, shape index: {}]
  %s3 = inlined_call_operand.hbm [shape: bf16[512,1024], index: 3, kind: input, shape index: {}]
  %s4 = inlined_call_operand.hbm [shape: f32[1,1024], index: 4, kind: input, shape index: {}]
  %s5 = inlined_call_operand.hbm [shape: bf16[1024,128], index: 5, kind: input, shape index: {}]
  %s6 = inlined_call_operand.vmem [shape: f32[1,128], index: 6, kind: input, shape index: {}]
  %s7 = inlined_call_operand.hbm [shape: f32[8,128], index: 7, kind: output, shape index: {}]
  %s8 = sld [smem:[#allocation0]]
  $region62: #{tpu_custom_call.1} parent=0
    _
  %s10 = ssub.s32 1, %s8
  %s11 = scalar_select 0, %s10, %s8
  $region1: #{tpu_custom_call.1} parent=0
    #allocation2 [shape = 'u8[4096]{0}', space=vmem, size = 0x1000, scoped, tag = 'input window, operand 0, single buffered']
    #allocation3 [shape = 's32[1]{0}', space=sflag, size = 0x4, scoped, tag = 'scoped memory for tpu_custom_call.1']
    #allocation4 [shape = 's32[1]{0}', space=sflag, size = 0x4, scoped, tag = 'scoped memory for tpu_custom_call.1']
    #allocation5 [shape = 'u8[16384]{0}', space=vmem, size = 0x4000, scoped, tag = 'input window, operand 1, single buffered']
    #allocation6 [shape = 's32[1]{0}', space=sflag, size = 0x4, scoped, tag = 'scoped memory for tpu_custom_call.1']
    #allocation7 [shape = 'u8[2048]{0}', space=vmem, size = 0x800, scoped, tag = 'input window, operand 2, single buffered']
    #allocation8 [shape = 'u8[1048576]{0}', space=vmem, size = 0x100000, scoped, tag = 'input window, operand 3, single buffered']
    #allocation9 [shape = 's32[1]{0}', space=sflag, size = 0x4, scoped, tag = 'scoped memory for tpu_custom_call.1']
    #allocation10 [shape = 'u8[4096]{0}', space=vmem, size = 0x1000, scoped, tag = 'input window, operand 4, single buffered']
    #allocation11 [shape = 'u8[262144]{0}', space=vmem, size = 0x40000, scoped, tag = 'input window, operand 5, single buffered']
    #allocation12 [shape = 's32[1]{0}', space=sflag, size = 0x4, scoped, tag = 'scoped memory for tpu_custom_call.1']
    #allocation13 [shape = 'u8[4096]{0}', space=vmem, size = 0x1000, scoped, tag = 'output window, operand 0, single buffered']
    %12 = vsyncpa [#allocation3], 0
    %13 = vsyncpa [#allocation6], 0
    %14 = vsyncpa [#allocation9], 0
    %15 = vsyncpa [#allocation12], 0
    %16 = vsyncpa [#allocation4], 0
    // Predicated region
    $region2: #{tpu_custom_call.1} parent=1 // pred_check
      _
    $region3: #{tpu_custom_call.1} parent=1 // pred_check_branch
      %18 = sbr.rel (0) target = $region5
    $region4: #{tpu_custom_call.1} parent=1 // pred_region
      %s20 = ssub.s32 128, 128
      %21 = vsyncadd [#allocation3], %s20
      %s23 = sshll.u32 [#allocation2], 4
      %s24 = int_to_ptr.vmem [resolvable:$true] %s23
      %26 = dma.hbm_to_vmem [thread:$0]  %s0, 128, %s24, [#allocation3]
    $region5: #{tpu_custom_call.1} parent=1 // pred_fallthru
      _
    // Predicated region
    $region6: #{tpu_custom_call.1} parent=1 // pred_check
      _
    $region7: #{tpu_custom_call.1} parent=1 // pred_check_branch
      %28 = sbr.rel (0) target = $region9
    $region8: #{tpu_custom_call.1} parent=1 // pred_region
      %s30 = ssub.s32 512, 512
      %31 = vsyncadd [#allocation6], %s30
      %s32 = sshll.u32 [#allocation5], 4
      %s33 = int_to_ptr.vmem [resolvable:$true] %s32
      %38 = dma.hbm_to_vmem [thread:$0]  %s1, 512, %s33, [#allocation6], 256, 256, 16
    $region9: #{tpu_custom_call.1} parent=1 // pred_fallthru
      _
    // Predicated region
    $region10: #{tpu_custom_call.1} parent=1 // pred_check
      _
    $region11: #{tpu_custom_call.1} parent=1 // pred_check_branch
      %40 = sbr.rel (0) target = $region13
    $region12: #{tpu_custom_call.1} parent=1 // pred_region
      %s42 = ssub.s32 64, 64
      %43 = vsyncadd [#allocation6], %s42
      %s45 = sshll.u32 [#allocation7], 4
      %s46 = int_to_ptr.vmem [resolvable:$true] %s45
      %48 = dma.hbm_to_vmem [thread:$0]  %s2, 64, %s46, [#allocation6]
    $region13: #{tpu_custom_call.1} parent=1 // pred_fallthru
      _
    // Predicated region
    $region14: #{tpu_custom_call.1} parent=1 // pred_check
      _
    $region15: #{tpu_custom_call.1} parent=1 // pred_check_branch
      %50 = sbr.rel (0) target = $region17
    $region16: #{tpu_custom_call.1} parent=1 // pred_region
      %s52 = ssub.s32 32768, 32768
      %53 = vsyncadd [#allocation9], %s52
      %s54 = sshll.u32 [#allocation8], 4
      %s55 = int_to_ptr.vmem [resolvable:$true] %s54
      %60 = dma.hbm_to_vmem [thread:$0]  %s3, 32768, %s55, [#allocation9], 512, 512, 32
    $region17: #{tpu_custom_call.1} parent=1 // pred_fallthru
      _
    // Predicated region
    $region18: #{tpu_custom_call.1} parent=1 // pred_check
      _
    $region19: #{tpu_custom_call.1} parent=1 // pred_check_branch
      %62 = sbr.rel (0) target = $region21
    $region20: #{tpu_custom_call.1} parent=1 // pred_region
      %s64 = ssub.s32 128, 128
      %65 = vsyncadd [#allocation9], %s64
      %s67 = sshll.u32 [#allocation10], 4
      %s68 = int_to_ptr.vmem [resolvable:$true] %s67
      %70 = dma.hbm_to_vmem [thread:$0]  %s4, 128, %s68, [#allocation9]
    $region21: #{tpu_custom_call.1} parent=1 // pred_fallthru
      _
    // Predicated region
    $region22: #{tpu_custom_call.1} parent=1 // pred_check
      _
    $region23: #{tpu_custom_call.1} parent=1 // pred_check_branch
      %72 = sbr.rel (0) target = $region25
    $region24: #{tpu_custom_call.1} parent=1 // pred_region
      %s74 = ssub.s32 8192, 8192
      %75 = vsyncadd [#allocation12], %s74
      %s76 = sshll.u32 [#allocation11], 4
      %s77 = int_to_ptr.vmem [resolvable:$true] %s76
      %82 = dma.hbm_to_vmem [thread:$0]  %s5, 8192, %s77, [#allocation12], 64, 64, 4
    $region25: #{tpu_custom_call.1} parent=1 // pred_fallthru
      _
    // Predicated region
    $region26: #{tpu_custom_call.1} parent=1 // pred_check
      _
    $region27: #{tpu_custom_call.1} parent=1 // pred_check_branch
      %84 = sbr.rel (0) target = $region29
    $region28: #{tpu_custom_call.1} parent=1 // pred_region
      _
    $region29: #{tpu_custom_call.1} parent=1 // pred_fallthru
      _
    // Predicated region
    $region30: #{tpu_custom_call.1} parent=1 // pred_check
      _
    $region31: #{tpu_custom_call.1} parent=1 // pred_check_branch
      %86 = sbr.rel (0) target = $region33
    $region32: #{tpu_custom_call.1} parent=1 // pred_region
      %87 = dma.done [#allocation3], 128
    $region33: #{tpu_custom_call.1} parent=1 // pred_fallthru
      _
    // Predicated region
    $region34: #{tpu_custom_call.1} parent=1 // pred_check
      _
    $region35: #{tpu_custom_call.1} parent=1 // pred_check_branch
      %89 = sbr.rel (0) target = $region37
    $region36: #{tpu_custom_call.1} parent=1 // pred_region
      %90 = dma.done [#allocation6], 512
    $region37: #{tpu_custom_call.1} parent=1 // pred_fallthru
      _
    // Predicated region
    $region38: #{tpu_custom_call.1} parent=1 // pred_check
      _
    $region39: #{tpu_custom_call.1} parent=1 // pred_check_branch
      %92 = sbr.rel (0) target = $region41
    $region40: #{tpu_custom_call.1} parent=1 // pred_region
      %93 = dma.done [#allocation6], 64
    $region41: #{tpu_custom_call.1} parent=1 // pred_fallthru
      _
    // Predicated region
    $region42: #{tpu_custom_call.1} parent=1 // pred_check
      _
    $region43: #{tpu_custom_call.1} parent=1 // pred_check_branch
      %95 = sbr.rel (0) target = $region45
    $region44: #{tpu_custom_call.1} parent=1 // pred_region
      %96 = dma.done [#allocation9], 32768
    $region45: #{tpu_custom_call.1} parent=1 // pred_fallthru
      _
    // Predicated region
    $region46: #{tpu_custom_call.1} parent=1 // pred_check
      _
    $region47: #{tpu_custom_call.1} parent=1 // pred_check_branch
      %98 = sbr.rel (0) target = $region49
    $region48: #{tpu_custom_call.1} parent=1 // pred_region
      %99 = dma.done [#allocation9], 128
    $region49: #{tpu_custom_call.1} parent=1 // pred_fallthru
      _
    // Predicated region
    $region50: #{tpu_custom_call.1} parent=1 // pred_check
      _
    $region51: #{tpu_custom_call.1} parent=1 // pred_check_branch
      %101 = sbr.rel (0) target = $region53
    $region52: #{tpu_custom_call.1} parent=1 // pred_region
      %102 = dma.done [#allocation12], 8192
    $region53: #{tpu_custom_call.1} parent=1 // pred_fallthru
      _
    %v104 = vld [vmem:[#allocation2] sm:$0xff]
    %v105 = vpack.c.bf16 %v104, %v104
    %v106 = vld [vmem:[#allocation5] sm:$0xff]
    %v107 = vld [vmem:[#allocation5 + $0x8] sm:$0xff]
    %v108 = vld [vmem:[#allocation5 + $0x10] sm:$0xff]
    %v109 = vld [vmem:[#allocation5 + $0x18] sm:$0xff]
    %v110 = vld [vmem:[#allocation7] sm:$0xf]
    %v112 = vlaneseq
    %v113 = vshrl.u32 %v112, 7
    %v114 = vsub.s32 0, %v113
    %v115 = vrot.slane %v110, %v114
    %v116 = vlaneseq
    %v117 = vshrl.u32 %v116, 7
    %v118 = vsub.s32 1, %v117
    %v119 = vrot.slane %v110, %v118
    %v120 = vlaneseq
    %v121 = vshrl.u32 %v120, 7
    %v122 = vsub.s32 2, %v121
    %v123 = vrot.slane %v110, %v122
    %v124 = vlaneseq
    %v125 = vshrl.u32 %v124, 7
    %v126 = vsub.s32 3, %v125
    %v127 = vrot.slane %v110, %v126
    %v136 = vunpack.c.l.b16 %v106
    %v137 = vunpack.c.h.b16 %v106
    %v138 = vunpack.c.l.b16 %v107
    %v139 = vunpack.c.h.b16 %v107
    %v140 = vunpack.c.l.b16 %v108
    %v141 = vunpack.c.h.b16 %v108
    %v142 = vunpack.c.l.b16 %v109
    %v143 = vunpack.c.h.b16 %v109
    %v144 = vpack.c.b16 %v140, %v136
    %v145 = vpack.c.b16 %v141, %v137
    %v146 = vpack.c.b16 %v142, %v138
    %v147 = vpack.c.b16 %v143, %v139
    %vm152 = vcmask 130048
    %v154 = vsel %vm152, %v105, 0
    %156 = vmatprep.subr.bf16.mxu0 0
    %157 = vmatpush1.bf16.msra.mxu0 0
    %158 = vmatprep.subr.bf16.mxu0 0
    %159 = vmatpush1.bf16.msra.mxu0 0
    %160 = vmatprep.subr.bf16.mxu0 0
    %161 = vmatpush1.bf16.msra.mxu0 0
    %162 = vmatprep.subr.bf16.mxu0 0
    %163 = vmatpush1.bf16.msra.mxu0 0
    %164 = vmatprep.subr.bf16.mxu0 0
    %165 = vmatpush1.bf16.msra.mxu0 0
    %166 = vmatprep.subr.bf16.mxu0 0
    %167 = vmatpush1.bf16.msra.mxu0 0
    %168 = vmatprep.subr.bf16.mxu0 0
    %169 = vmatpush1.bf16.msra.mxu0 0
    %170 = vmatprep.subr.bf16.mxu0 %v145
    %171 = vmatpush1.bf16.msra.mxu0 %v144
    %172 = vmatprep.subr.bf16.mxu0 0
    %173 = vmatpush2.bf16.msra.mxu0 0
    %174 = vmatprep.subr.bf16.mxu0 0
    %175 = vmatpush2.bf16.msra.mxu0 0
    %176 = vmatprep.subr.bf16.mxu0 0
    %177 = vmatpush2.bf16.msra.mxu0 0
    %178 = vmatprep.subr.bf16.mxu0 0
    %179 = vmatpush2.bf16.msra.mxu0 0
    %180 = vmatprep.subr.bf16.mxu0 0
    %181 = vmatpush2.bf16.msra.mxu0 0
    %182 = vmatprep.subr.bf16.mxu0 0
    %183 = vmatpush2.bf16.msra.mxu0 0
    %184 = vmatprep.subr.bf16.mxu0 0
    %185 = vmatpush2.bf16.msra.mxu0 0
    %186 = vmatprep.subr.bf16.mxu0 0
    %187 = vmatpush2.bf16.msra.mxu0 0
    %188 = vmatprep.mubr.bf16.mxu0 0
    %189 = vmatmul.mubr.bf16.gmra.mxu0 %v154
    %v190 = vpop.f32.mrf.mxu0
    %v191 = vadd.f32 %v115, %v190
    %v192 = vpop.f32.mrf.mxu0
    %v193 = vadd.f32 %v119, %v192
    %v194 = vpop.f32.mrf.mxu0
    %v195 = vpop.f32.mrf.mxu0
    %196 = vdwg.mxu0
    %197 = vmatprep.subr.bf16.mxu0 0
    %198 = vmatpush1.bf16.msra.mxu0 0
    %199 = vmatprep.subr.bf16.mxu0 0
    %200 = vmatpush1.bf16.msra.mxu0 0
    %201 = vmatprep.subr.bf16.mxu0 0
    %202 = vmatpush1.bf16.msra.mxu0 0
    %203 = vmatprep.subr.bf16.mxu0 0
    %204 = vmatpush1.bf16.msra.mxu0 0
    %205 = vmatprep.subr.bf16.mxu0 0
    %206 = vmatpush1.bf16.msra.mxu0 0
    %207 = vmatprep.subr.bf16.mxu0 0
    %208 = vmatpush1.bf16.msra.mxu0 0
    %209 = vmatprep.subr.bf16.mxu0 0
    %210 = vmatpush1.bf16.msra.mxu0 0
    %211 = vmatprep.subr.bf16.mxu0 %v147
    %212 = vmatpush1.bf16.msra.mxu0 %v146
    %213 = vmatprep.subr.bf16.mxu0 0
    %214 = vmatpush2.bf16.msra.mxu0 0
    %215 = vmatprep.subr.bf16.mxu0 0
    %216 = vmatpush2.bf16.msra.mxu0 0
    %217 = vmatprep.subr.bf16.mxu0 0
    %218 = vmatpush2.bf16.msra.mxu0 0
    %219 = vmatprep.subr.bf16.mxu0 0
    %220 = vmatpush2.bf16.msra.mxu0 0
    %221 = vmatprep.subr.bf16.mxu0 0
    %222 = vmatpush2.bf16.msra.mxu0 0
    %223 = vmatprep.subr.bf16.mxu0 0
    %224 = vmatpush2.bf16.msra.mxu0 0
    %225 = vmatprep.subr.bf16.mxu0 0
    %226 = vmatpush2.bf16.msra.mxu0 0
    %227 = vmatprep.subr.bf16.mxu0 0
    %228 = vmatpush2.bf16.msra.mxu0 0
    %229 = vmatprep.mubr.bf16.mxu0 0
    %230 = vmatmul.mubr.bf16.gmra.mxu0 %v154
    %v231 = vpop.f32.mrf.mxu0
    %v232 = vadd.f32 %v123, %v231
    %v233 = vpop.f32.mrf.mxu0
    %v234 = vadd.f32 %v127, %v233
    %v235 = vpop.f32.mrf.mxu0
    %v236 = vpop.f32.mrf.mxu0
    %237 = vdwg.mxu0
    %v238 = vmax.f32 %v191, 0.0
    %v239 = vmax.f32 %v193, 0.0
    %v240 = vmax.f32 %v232, 0.0
    %v241 = vmax.f32 %v234, 0.0
    %v242 = vpack.c.bf16 %v238, %v238
    %v243 = vpack.c.bf16 %v239, %v239
    %v244 = vpack.c.bf16 %v240, %v240
    %v245 = vpack.c.bf16 %v241, %v241
    %v246 = vld [vmem:[#allocation8] sm:$0xff]
    %v247 = vld [vmem:[#allocation8 + $0x8] sm:$0xff]
    %v248 = vld [vmem:[#allocation8 + $0x10] sm:$0xff]
    %v249 = vld [vmem:[#allocation8 + $0x18] sm:$0xff]
    %v250 = vld [vmem:[#allocation8 + $0x20] sm:$0xff]
    %v251 = vld [vmem:[#allocation8 + $0x28] sm:$0xff]
    %v252 = vld [vmem:[#allocation8 + $0x30] sm:$0xff]
    %v253 = vld [vmem:[#allocation8 + $0x38] sm:$0xff]
    %v254 = vld [vmem:[#allocation8 + $0x40] sm:$0xff]
    %v255 = vld [vmem:[#allocation8 + $0x48] sm:$0xff]
    %v256 = vld [vmem:[#allocation8 + $0x50] sm:$0xff]
    %v257 = vld [vmem:[#allocation8 + $0x58] sm:$0xff]
    %v258 = vld [vmem:[#allocation8 + $0x60] sm:$0xff]
    %v259 = vld [vmem:[#allocation8 + $0x68] sm:$0xff]
    %v260 = vld [vmem:[#allocation8 + $0x70] sm:$0xff]
    %v261 = vld [vmem:[#allocation8 + $0x78] sm:$0xff]
    %v262 = vld [vmem:[#allocation8 + $0x80] sm:$0xff]
    %v263 = vld [vmem:[#allocation8 + $0x88] sm:$0xff]
    %v264 = vld [vmem:[#allocation8 + $0x90] sm:$0xff]
    %v265 = vld [vmem:[#allocation8 + $0x98] sm:$0xff]
    %v266 = vld [vmem:[#allocation8 + $0xa0] sm:$0xff]
    %v267 = vld [vmem:[#allocation8 + $0xa8] sm:$0xff]
    %v268 = vld [vmem:[#allocation8 + $0xb0] sm:$0xff]
    %v269 = vld [vmem:[#allocation8 + $0xb8] sm:$0xff]
    %v270 = vld [vmem:[#allocation8 + $0xc0] sm:$0xff]
    %v271 = vld [vmem:[#allocation8 + $0xc8] sm:$0xff]
    %v272 = vld [vmem:[#allocation8 + $0xd0] sm:$0xff]
    %v273 = vld [vmem:[#allocation8 + $0xd8] sm:$0xff]
    %v274 = vld [vmem:[#allocation8 + $0xe0] sm:$0xff]
    %v275 = vld [vmem:[#allocation8 + $0xe8] sm:$0xff]
    %v276 = vld [vmem:[#allocation8 + $0xf0] sm:$0xff]
    %v277 = vld [vmem:[#allocation8 + $0xf8] sm:$0xff]
    %v278 = vld [vmem:[#allocation8 + $0x100] sm:$0xff]
    %v279 = vld [vmem:[#allocation8 + $0x108] sm:$0xff]
    %v280 = vld [vmem:[#allocation8 + $0x110] sm:$0xff]
    %v281 = vld [vmem:[#allocation8 + $0x118] sm:$0xff]
    %v282 = vld [vmem:[#allocation8 + $0x120] sm:$0xff]
    %v283 = vld [vmem:[#allocation8 + $0x128] sm:$0xff]
    %v284 = vld [vmem:[#allocation8 + $0x130] sm:$0xff]
    %v285 = vld [vmem:[#allocation8 + $0x138] sm:$0xff]
    %v286 = vld [vmem:[#allocation8 + $0x140] sm:$0xff]
    %v287 = vld [vmem:[#allocation8 + $0x148] sm:$0xff]
    %v288 = vld [vmem:[#allocation8 + $0x150] sm:$0xff]
    %v289 = vld [vmem:[#allocation8 + $0x158] sm:$0xff]
    %v290 = vld [vmem:[#allocation8 + $0x160] sm:$0xff]
    %v291 = vld [vmem:[#allocation8 + $0x168] sm:$0xff]
    %v292 = vld [vmem:[#allocation8 + $0x170] sm:$0xff]
    %v293 = vld [vmem:[#allocation8 + $0x178] sm:$0xff]
    %v294 = vld [vmem:[#allocation8 + $0x180] sm:$0xff]
    %v295 = vld [vmem:[#allocation8 + $0x188] sm:$0xff]
    %v296 = vld [vmem:[#allocation8 + $0x190] sm:$0xff]
    %v297 = vld [vmem:[#allocation8 + $0x198] sm:$0xff]
    %v298 = vld [vmem:[#allocation8 + $0x1a0] sm:$0xff]
    %v299 = vld [vmem:[#allocation8 + $0x1a8] sm:$0xff]
    %v300 = vld [vmem:[#allocation8 + $0x1b0] sm:$0xff]
    %v301 = vld [vmem:[#allocation8 + $0x1b8] sm:$0xff]
    %v302 = vld [vmem:[#allocation8 + $0x1c0] sm:$0xff]
    %v303 = vld [vmem:[#allocation8 + $0x1c8] sm:$0xff]
    %v304 = vld [vmem:[#allocation8 + $0x1d0] sm:$0xff]
    %v305 = vld [vmem:[#allocation8 + $0x1d8] sm:$0xff]
    %v306 = vld [vmem:[#allocation8 + $0x1e0] sm:$0xff]
    %v307 = vld [vmem:[#allocation8 + $0x1e8] sm:$0xff]
    %v308 = vld [vmem:[#allocation8 + $0x1f0] sm:$0xff]
    %v309 = vld [vmem:[#allocation8 + $0x1f8] sm:$0xff]
    %v310 = vld [vmem:[#allocation8 + $0x200] sm:$0xff]
    %v311 = vld [vmem:[#allocation8 + $0x208] sm:$0xff]
    %v312 = vld [vmem:[#allocation8 + $0x210] sm:$0xff]
    %v313 = vld [vmem:[#allocation8 + $0x218] sm:$0xff]
    %v314 = vld [vmem:[#allocation8 + $0x220] sm:$0xff]
    %v315 = vld [vmem:[#allocation8 + $0x228] sm:$0xff]
    %v316 = vld [vmem:[#allocation8 + $0x230] sm:$0xff]
    %v317 = vld [vmem:[#allocation8 + $0x238] sm:$0xff]
    %v318 = vld [vmem:[#allocation8 + $0x240] sm:$0xff]
    %v319 = vld [vmem:[#allocation8 + $0x248] sm:$0xff]
    %v320 = vld [vmem:[#allocation8 + $0x250] sm:$0xff]
    %v321 = vld [vmem:[#allocation8 + $0x258] sm:$0xff]
    %v322 = vld [vmem:[#allocation8 + $0x260] sm:$0xff]
    %v323 = vld [vmem:[#allocation8 + $0x268] sm:$0xff]
    %v324 = vld [vmem:[#allocation8 + $0x270] sm:$0xff]
    %v325 = vld [vmem:[#allocation8 + $0x278] sm:$0xff]
    %v326 = vld [vmem:[#allocation8 + $0x280] sm:$0xff]
    %v327 = vld [vmem:[#allocation8 + $0x288] sm:$0xff]
    %v328 = vld [vmem:[#allocation8 + $0x290] sm:$0xff]
    %v329 = vld [vmem:[#allocation8 + $0x298] sm:$0xff]
    %v330 = vld [vmem:[#allocation8 + $0x2a0] sm:$0xff]
    %v331 = vld [vmem:[#allocation8 + $0x2a8] sm:$0xff]
    %v332 = vld [vmem:[#allocation8 + $0x2b0] sm:$0xff]
    %v333 = vld [vmem:[#allocation8 + $0x2b8] sm:$0xff]
    %v334 = vld [vmem:[#allocation8 + $0x2c0] sm:$0xff]
    %v335 = vld [vmem:[#allocation8 + $0x2c8] sm:$0xff]
    %v336 = vld [vmem:[#allocation8 + $0x2d0] sm:$0xff]
    %v337 = vld [vmem:[#allocation8 + $0x2d8] sm:$0xff]
    %v338 = vld [vmem:[#allocation8 + $0x2e0] sm:$0xff]
    %v339 = vld [vmem:[#allocation8 + $0x2e8] sm:$0xff]
    %v340 = vld [vmem:[#allocation8 + $0x2f0] sm:$0xff]
    %v341 = vld [vmem:[#allocation8 + $0x2f8] sm:$0xff]
    %v342 = vld [vmem:[#allocation8 + $0x300] sm:$0xff]
    %v343 = vld [vmem:[#allocation8 + $0x308] sm:$0xff]
    %v344 = vld [vmem:[#allocation8 + $0x310] sm:$0xff]
    %v345 = vld [vmem:[#allocation8 + $0x318] sm:$0xff]
    %v346 = vld [vmem:[#allocation8 + $0x320] sm:$0xff]
    %v347 = vld [vmem:[#allocation8 + $0x328] sm:$0xff]
    %v348 = vld [vmem:[#allocation8 + $0x330] sm:$0xff]
    %v349 = vld [vmem:[#allocation8 + $0x338] sm:$0xff]
    %v350 = vld [vmem:[#allocation8 + $0x340] sm:$0xff]
    %v351 = vld [vmem:[#allocation8 + $0x348] sm:$0xff]
    %v352 = vld [vmem:[#allocation8 + $0x350] sm:$0xff]
    %v353 = vld [vmem:[#allocation8 + $0x358] sm:$0xff]
    %v354 = vld [vmem:[#allocation8 + $0x360] sm:$0xff]
    %v355 = vld [vmem:[#allocation8 + $0x368] sm:$0xff]
    %v356 = vld [vmem:[#allocation8 + $0x370] sm:$0xff]
    %v357 = vld [vmem:[#allocation8 + $0x378] sm:$0xff]
    %v358 = vld [vmem:[#allocation8 + $0x380] sm:$0xff]
    %v359 = vld [vmem:[#allocation8 + $0x388] sm:$0xff]
    %v360 = vld [vmem:[#allocation8 + $0x390] sm:$0xff]
    %v361 = vld [vmem:[#allocation8 + $0x398] sm:$0xff]
    %v362 = vld [vmem:[#allocation8 + $0x3a0] sm:$0xff]
    %v363 = vld [vmem:[#allocation8 + $0x3a8] sm:$0xff]
    %v364 = vld [vmem:[#allocation8 + $0x3b0] sm:$0xff]
    %v365 = vld [vmem:[#allocation8 + $0x3b8] sm:$0xff]
    %v366 = vld [vmem:[#allocation8 + $0x3c0] sm:$0xff]
    %v367 = vld [vmem:[#allocation8 + $0x3c8] sm:$0xff]
    %v368 = vld [vmem:[#allocation8 + $0x3d0] sm:$0xff]
    %v369 = vld [vmem:[#allocation8 + $0x3d8] sm:$0xff]
    %v370 = vld [vmem:[#allocation8 + $0x3e0] sm:$0xff]
    %v371 = vld [vmem:[#allocation8 + $0x3e8] sm:$0xff]
    %v372 = vld [vmem:[#allocation8 + $0x3f0] sm:$0xff]
    %v373 = vld [vmem:[#allocation8 + $0x3f8] sm:$0xff]
    %v374 = vld [vmem:[#allocation8 + $0x400] sm:$0xff]
    %v375 = vld [vmem:[#allocation8 + $0x408] sm:$0xff]
    %v376 = vld [vmem:[#allocation8 + $0x410] sm:$0xff]
    %v377 = vld [vmem:[#allocation8 + $0x418] sm:$0xff]
    %v378 = vld [vmem:[#allocation8 + $0x420] sm:$0xff]
    %v379 = vld [vmem:[#allocation8 + $0x428] sm:$0xff]
    %v380 = vld [vmem:[#allocation8 + $0x430] sm:$0xff]
    %v381 = vld [vmem:[#allocation8 + $0x438] sm:$0xff]
    %v382 = vld [vmem:[#allocation8 + $0x440] sm:$0xff]
    %v383 = vld [vmem:[#allocation8 + $0x448] sm:$0xff]
    %v384 = vld [vmem:[#allocation8 + $0x450] sm:$0xff]
    %v385 = vld [vmem:[#allocation8 + $0x458] sm:$0xff]
    %v386 = vld [vmem:[#allocation8 + $0x460] sm:$0xff]
    %v387 = vld [vmem:[#allocation8 + $0x468] sm:$0xff]
    %v388 = vld [vmem:[#allocation8 + $0x470] sm:$0xff]
    %v389 = vld [vmem:[#allocation8 + $0x478] sm:$0xff]
    %v390 = vld [vmem:[#allocation8 + $0x480] sm:$0xff]
    %v391 = vld [vmem:[#allocation8 + $0x488] sm:$0xff]
    %v392 = vld [vmem:[#allocation8 + $0x490] sm:$0xff]
    %v393 = vld [vmem:[#allocation8 + $0x498] sm:$0xff]
    %v394 = vld [vmem:[#allocation8 + $0x4a0] sm:$0xff]
    %v395 = vld [vmem:[#allocation8 + $0x4a8] sm:$0xff]
    %v396 = vld [vmem:[#allocation8 + $0x4b0] sm:$0xff]
    %v397 = vld [vmem:[#allocation8 + $0x4b8] sm:$0xff]
    %v398 = vld [vmem:[#allocation8 + $0x4c0] sm:$0xff]
    %v399 = vld [vmem:[#allocation8 + $0x4c8] sm:$0xff]
    %v400 = vld [vmem:[#allocation8 + $0x4d0] sm:$0xff]
    %v401 = vld [vmem:[#allocation8 + $0x4d8] sm:$0xff]
    %v402 = vld [vmem:[#allocation8 + $0x4e0] sm:$0xff]
    %v403 = vld [vmem:[#allocation8 + $0x4e8] sm:$0xff]
    %v404 = vld [vmem:[#allocation8 + $0x4f0] sm:$0xff]
    %v405 = vld [vmem:[#allocation8 + $0x4f8] sm:$0xff]
    %v406 = vld [vmem:[#allocation8 + $0x500] sm:$0xff]
    %v407 = vld [vmem:[#allocation8 + $0x508] sm:$0xff]
    %v408 = vld [vmem:[#allocation8 + $0x510] sm:$0xff]
    %v409 = vld [vmem:[#allocation8 + $0x518] sm:$0xff]
    %v410 = vld [vmem:[#allocation8 + $0x520] sm:$0xff]
    %v411 = vld [vmem:[#allocation8 + $0x528] sm:$0xff]
    %v412 = vld [vmem:[#allocation8 + $0x530] sm:$0xff]
    %v413 = vld [vmem:[#allocation8 + $0x538] sm:$0xff]
    %v414 = vld [vmem:[#allocation8 + $0x540] sm:$0xff]
    %v415 = vld [vmem:[#allocation8 + $0x548] sm:$0xff]
    %v416 = vld [vmem:[#allocation8 + $0x550] sm:$0xff]
    %v417 = vld [vmem:[#allocation8 + $0x558] sm:$0xff]
    %v418 = vld [vmem:[#allocation8 + $0x560] sm:$0xff]
    %v419 = vld [vmem:[#allocation8 + $0x568] sm:$0xff]
    %v420 = vld [vmem:[#allocation8 + $0x570] sm:$0xff]
    %v421 = vld [vmem:[#allocation8 + $0x578] sm:$0xff]
    %v422 = vld [vmem:[#allocation8 + $0x580] sm:$0xff]
    %v423 = vld [vmem:[#allocation8 + $0x588] sm:$0xff]
    %v424 = vld [vmem:[#allocation8 + $0x590] sm:$0xff]
    %v425 = vld [vmem:[#allocation8 + $0x598] sm:$0xff]
    %v426 = vld [vmem:[#allocation8 + $0x5a0] sm:$0xff]
    %v427 = vld [vmem:[#allocation8 + $0x5a8] sm:$0xff]
    %v428 = vld [vmem:[#allocation8 + $0x5b0] sm:$0xff]
    %v429 = vld [vmem:[#allocation8 + $0x5b8] sm:$0xff]
    %v430 = vld [vmem:[#allocation8 + $0x5c0] sm:$0xff]
    %v431 = vld [vmem:[#allocation8 + $0x5c8] sm:$0xff]
    %v432 = vld [vmem:[#allocation8 + $0x5d0] sm:$0xff]
    %v433 = vld [vmem:[#allocation8 + $0x5d8] sm:$0xff]
    %v434 = vld [vmem:[#allocation8 + $0x5e0] sm:$0xff]
    %v435 = vld [vmem:[#allocation8 + $0x5e8] sm:$0xff]
    %v436 = vld [vmem:[#allocation8 + $0x5f0] sm:$0xff]
    %v437 = vld [vmem:[#allocation8 + $0x5f8] sm:$0xff]
    %v438 = vld [vmem:[#allocation8 + $0x600] sm:$0xff]
    %v439 = vld [vmem:[#allocation8 + $0x608] sm:$0xff]
    %v440 = vld [vmem:[#allocation8 + $0x610] sm:$0xff]
    %v441 = vld [vmem:[#allocation8 + $0x618] sm:$0xff]
    %v442 = vld [vmem:[#allocation8 + $0x620] sm:$0xff]
    %v443 = vld [vmem:[#allocation8 + $0x628] sm:$0xff]
    %v444 = vld [vmem:[#allocation8 + $0x630] sm:$0xff]
    %v445 = vld [vmem:[#allocation8 + $0x638] sm:$0xff]
    %v446 = vld [vmem:[#allocation8 + $0x640] sm:$0xff]
    %v447 = vld [vmem:[#allocation8 + $0x648] sm:$0xff]
    %v448 = vld [vmem:[#allocation8 + $0x650] sm:$0xff]
    %v449 = vld [vmem:[#allocation8 + $0x658] sm:$0xff]
    %v450 = vld [vmem:[#allocation8 + $0x660] sm:$0xff]
    %v451 = vld [vmem:[#allocation8 + $0x668] sm:$0xff]
    %v452 = vld [vmem:[#allocation8 + $0x670] sm:$0xff]
    %v453 = vld [vmem:[#allocation8 + $0x678] sm:$0xff]
    %v454 = vld [vmem:[#allocation8 + $0x680] sm:$0xff]
    %v455 = vld [vmem:[#allocation8 + $0x688] sm:$0xff]
    %v456 = vld [vmem:[#allocation8 + $0x690] sm:$0xff]
    %v457 = vld [vmem:[#allocation8 + $0x698] sm:$0xff]
    %v458 = vld [vmem:[#allocation8 + $0x6a0] sm:$0xff]
    %v459 = vld [vmem:[#allocation8 + $0x6a8] sm:$0xff]
    %v460 = vld [vmem:[#allocation8 + $0x6b0] sm:$0xff]
    %v461 = vld [vmem:[#allocation8 + $0x6b8] sm:$0xff]
    %v462 = vld [vmem:[#allocation8 + $0x6c0] sm:$0xff]
    %v463 = vld [vmem:[#allocation8 + $0x6c8] sm:$0xff]
    %v464 = vld [vmem:[#allocation8 + $0x6d0] sm:$0xff]
    %v465 = vld [vmem:[#allocation8 + $0x6d8] sm:$0xff]
    %v466 = vld [vmem:[#allocation8 + $0x6e0] sm:$0xff]
    %v467 = vld [vmem:[#allocation8 + $0x6e8] sm:$0xff]
    %v468 = vld [vmem:[#allocation8 + $0x6f0] sm:$0xff]
    %v469 = vld [vmem:[#allocation8 + $0x6f8] sm:$0xff]
    %v470 = vld [vmem:[#allocation8 + $0x700] sm:$0xff]
    %v471 = vld [vmem:[#allocation8 + $0x708] sm:$0xff]
    %v472 = vld [vmem:[#allocation8 + $0x710] sm:$0xff]
    %v473 = vld [vmem:[#allocation8 + $0x718] sm:$0xff]
    %v474 = vld [vmem:[#allocation8 + $0x720] sm:$0xff]
    %v475 = vld [vmem:[#allocation8 + $0x728] sm:$0xff]
    %v476 = vld [vmem:[#allocation8 + $0x730] sm:$0xff]
    %v477 = vld [vmem:[#allocation8 + $0x738] sm:$0xff]
    %v478 = vld [vmem:[#allocation8 + $0x740] sm:$0xff]
    %v479 = vld [vmem:[#allocation8 + $0x748] sm:$0xff]
    %v480 = vld [vmem:[#allocation8 + $0x750] sm:$0xff]
    %v481 = vld [vmem:[#allocation8 + $0x758] sm:$0xff]
    %v482 = vld [vmem:[#allocation8 + $0x760] sm:$0xff]
    %v483 = vld [vmem:[#allocation8 + $0x768] sm:$0xff]
    %v484 = vld [vmem:[#allocation8 + $0x770] sm:$0xff]
    %v485 = vld [vmem:[#allocation8 + $0x778] sm:$0xff]
    %v486 = vld [vmem:[#allocation8 + $0x780] sm:$0xff]
    %v487 = vld [vmem:[#allocation8 + $0x788] sm:$0xff]
    %v488 = vld [vmem:[#allocation8 + $0x790] sm:$0xff]
    %v489 = vld [vmem:[#allocation8 + $0x798] sm:$0xff]
    %v490 = vld [vmem:[#allocation8 + $0x7a0] sm:$0xff]
    %v491 = vld [vmem:[#allocation8 + $0x7a8] sm:$0xff]
    %v492 = vld [vmem:[#allocation8 + $0x7b0] sm:$0xff]
    %v493 = vld [vmem:[#allocation8 + $0x7b8] sm:$0xff]
    %v494 = vld [vmem:[#allocation8 + $0x7c0] sm:$0xff]
    %v495 = vld [vmem:[#allocation8 + $0x7c8] sm:$0xff]
    %v496 = vld [vmem:[#allocation8 + $0x7d0] sm:$0xff]
    %v497 = vld [vmem:[#allocation8 + $0x7d8] sm:$0xff]
    %v498 = vld [vmem:[#allocation8 + $0x7e0] sm:$0xff]
    %v499 = vld [vmem:[#allocation8 + $0x7e8] sm:$0xff]
    %v500 = vld [vmem:[#allocation8 + $0x7f0] sm:$0xff]
    %v501 = vld [vmem:[#allocation8 + $0x7f8] sm:$0xff]
    %v502 = vld [vmem:[#allocation10] sm:$0xff]
    %v504 = vlaneseq
    %v505 = vshrl.u32 %v504, 7
    %v506 = vsub.s32 0, %v505
    %v507 = vrot.slane %v502, %v506
    %v508 = vlaneseq
    %v509 = vshrl.u32 %v508, 7
    %v510 = vsub.s32 1, %v509
    %v511 = vrot.slane %v502, %v510
    %v512 = vlaneseq
    %v513 = vshrl.u32 %v512, 7
    %v514 = vsub.s32 2, %v513
    %v515 = vrot.slane %v502, %v514
    %v516 = vlaneseq
    %v517 = vshrl.u32 %v516, 7
    %v518 = vsub.s32 3, %v517
    %v519 = vrot.slane %v502, %v518
    %v520 = vlaneseq
    %v521 = vshrl.u32 %v520, 7
    %v522 = vsub.s32 4, %v521
    %v523 = vrot.slane %v502, %v522
    %v524 = vlaneseq
    %v525 = vshrl.u32 %v524, 7
    %v526 = vsub.s32 5, %v525
    %v527 = vrot.slane %v502, %v526
    %v528 = vlaneseq
    %v529 = vshrl.u32 %v528, 7
    %v530 = vsub.s32 6, %v529
    %v531 = vrot.slane %v502, %v530
    %v532 = vlaneseq
    %v533 = vshrl.u32 %v532, 7
    %v534 = vsub.s32 7, %v533
    %v535 = vrot.slane %v502, %v534
    %v800 = vunpack.c.l.b16 %v246
    %v801 = vunpack.c.h.b16 %v246
    %v802 = vunpack.c.l.b16 %v247
    %v803 = vunpack.c.h.b16 %v247
    %v804 = vunpack.c.l.b16 %v248
    %v805 = vunpack.c.h.b16 %v248
    %v806 = vunpack.c.l.b16 %v249
    %v807 = vunpack.c.h.b16 %v249
    %v808 = vunpack.c.l.b16 %v250
    %v809 = vunpack.c.h.b16 %v250
    %v810 = vunpack.c.l.b16 %v251
    %v811 = vunpack.c.h.b16 %v251
    %v812 = vunpack.c.l.b16 %v252
    %v813 = vunpack.c.h.b16 %v252
    %v814 = vunpack.c.l.b16 %v253
    %v815 = vunpack.c.h.b16 %v253
    %v816 = vunpack.c.l.b16 %v254
    %v817 = vunpack.c.h.b16 %v254
    %v818 = vunpack.c.l.b16 %v255
    %v819 = vunpack.c.h.b16 %v255
    %v820 = vunpack.c.l.b16 %v256
    %v821 = vunpack.c.h.b16 %v256
    %v822 = vunpack.c.l.b16 %v257
    %v823 = vunpack.c.h.b16 %v257
    %v824 = vunpack.c.l.b16 %v258
    %v825 = vunpack.c.h.b16 %v258
    %v826 = vunpack.c.l.b16 %v259
    %v827 = vunpack.c.h.b16 %v259
    %v828 = vunpack.c.l.b16 %v260
    %v829 = vunpack.c.h.b16 %v260
    %v830 = vunpack.c.l.b16 %v261
    %v831 = vunpack.c.h.b16 %v261
    %v832 = vunpack.c.l.b16 %v262
    %v833 = vunpack.c.h.b16 %v262
    %v834 = vunpack.c.l.b16 %v263
    %v835 = vunpack.c.h.b16 %v263
    %v836 = vunpack.c.l.b16 %v264
    %v837 = vunpack.c.h.b16 %v264
    %v838 = vunpack.c.l.b16 %v265
    %v839 = vunpack.c.h.b16 %v265
    %v840 = vunpack.c.l.b16 %v266
    %v841 = vunpack.c.h.b16 %v266
    %v842 = vunpack.c.l.b16 %v267
    %v843 = vunpack.c.h.b16 %v267
    %v844 = vunpack.c.l.b16 %v268
    %v845 = vunpack.c.h.b16 %v268
    %v846 = vunpack.c.l.b16 %v269
    %v847 = vunpack.c.h.b16 %v269
    %v848 = vunpack.c.l.b16 %v270
    %v849 = vunpack.c.h.b16 %v270
    %v850 = vunpack.c.l.b16 %v271
    %v851 = vunpack.c.h.b16 %v271
    %v852 = vunpack.c.l.b16 %v272
    %v853 = vunpack.c.h.b16 %v272
    %v854 = vunpack.c.l.b16 %v273
    %v855 = vunpack.c.h.b16 %v273
    %v856 = vunpack.c.l.b16 %v274
    %v857 = vunpack.c.h.b16 %v274
    %v858 = vunpack.c.l.b16 %v275
    %v859 = vunpack.c.h.b16 %v275
    %v860 = vunpack.c.l.b16 %v276
    %v861 = vunpack.c.h.b16 %v276
    %v862 = vunpack.c.l.b16 %v277
    %v863 = vunpack.c.h.b16 %v277
    %v864 = vunpack.c.l.b16 %v278
    %v865 = vunpack.c.h.b16 %v278
    %v866 = vunpack.c.l.b16 %v279
    %v867 = vunpack.c.h.b16 %v279
    %v868 = vunpack.c.l.b16 %v280
    %v869 = vunpack.c.h.b16 %v280
    %v870 = vunpack.c.l.b16 %v281
    %v871 = vunpack.c.h.b16 %v281
    %v872 = vunpack.c.l.b16 %v282
    %v873 = vunpack.c.h.b16 %v282
    %v874 = vunpack.c.l.b16 %v283
    %v875 = vunpack.c.h.b16 %v283
    %v876 = vunpack.c.l.b16 %v284
    %v877 = vunpack.c.h.b16 %v284
    %v878 = vunpack.c.l.b16 %v285
    %v879 = vunpack.c.h.b16 %v285
    %v880 = vunpack.c.l.b16 %v286
    %v881 = vunpack.c.h.b16 %v286
    %v882 = vunpack.c.l.b16 %v287
    %v883 = vunpack.c.h.b16 %v287
    %v884 = vunpack.c.l.b16 %v288
    %v885 = vunpack.c.h.b16 %v288
    %v886 = vunpack.c.l.b16 %v289
    %v887 = vunpack.c.h.b16 %v289
    %v888 = vunpack.c.l.b16 %v290
    %v889 = vunpack.c.h.b16 %v290
    %v890 = vunpack.c.l.b16 %v291
    %v891 = vunpack.c.h.b16 %v291
    %v892 = vunpack.c.l.b16 %v292
    %v893 = vunpack.c.h.b16 %v292
    %v894 = vunpack.c.l.b16 %v293
    %v895 = vunpack.c.h.b16 %v293
    %v896 = vunpack.c.l.b16 %v294
    %v897 = vunpack.c.h.b16 %v294
    %v898 = vunpack.c.l.b16 %v295
    %v899 = vunpack.c.h.b16 %v295
    %v900 = vunpack.c.l.b16 %v296
    %v901 = vunpack.c.h.b16 %v296
    %v902 = vunpack.c.l.b16 %v297
    %v903 = vunpack.c.h.b16 %v297
    %v904 = vunpack.c.l.b16 %v298
    %v905 = vunpack.c.h.b16 %v298
    %v906 = vunpack.c.l.b16 %v299
    %v907 = vunpack.c.h.b16 %v299
    %v908 = vunpack.c.l.b16 %v300
    %v909 = vunpack.c.h.b16 %v300
    %v910 = vunpack.c.l.b16 %v301
    %v911 = vunpack.c.h.b16 %v301
    %v912 = vunpack.c.l.b16 %v302
    %v913 = vunpack.c.h.b16 %v302
    %v914 = vunpack.c.l.b16 %v303
    %v915 = vunpack.c.h.b16 %v303
    %v916 = vunpack.c.l.b16 %v304
    %v917 = vunpack.c.h.b16 %v304
    %v918 = vunpack.c.l.b16 %v305
    %v919 = vunpack.c.h.b16 %v305
    %v920 = vunpack.c.l.b16 %v306
    %v921 = vunpack.c.h.b16 %v306
    %v922 = vunpack.c.l.b16 %v307
    %v923 = vunpack.c.h.b16 %v307
    %v924 = vunpack.c.l.b16 %v308
    %v925 = vunpack.c.h.b16 %v308
    %v926 = vunpack.c.l.b16 %v309
    %v927 = vunpack.c.h.b16 %v309
    %v928 = vunpack.c.l.b16 %v310
    %v929 = vunpack.c.h.b16 %v310
    %v930 = vunpack.c.l.b16 %v311
    %v931 = vunpack.c.h.b16 %v311
    %v932 = vunpack.c.l.b16 %v312
    %v933 = vunpack.c.h.b16 %v312
    %v934 = vunpack.c.l.b16 %v313
    %v935 = vunpack.c.h.b16 %v313
    %v936 = vunpack.c.l.b16 %v314
    %v937 = vunpack.c.h.b16 %v314
    %v938 = vunpack.c.l.b16 %v315
    %v939 = vunpack.c.h.b16 %v315
    %v940 = vunpack.c.l.b16 %v316
    %v941 = vunpack.c.h.b16 %v316
    %v942 = vunpack.c.l.b16 %v317
    %v943 = vunpack.c.h.b16 %v317
    %v944 = vunpack.c.l.b16 %v318
    %v945 = vunpack.c.h.b16 %v318
    %v946 = vunpack.c.l.b16 %v319
    %v947 = vunpack.c.h.b16 %v319
    %v948 = vunpack.c.l.b16 %v320
    %v949 = vunpack.c.h.b16 %v320
    %v950 = vunpack.c.l.b16 %v321
    %v951 = vunpack.c.h.b16 %v321
    %v952 = vunpack.c.l.b16 %v322
    %v953 = vunpack.c.h.b16 %v322
    %v954 = vunpack.c.l.b16 %v323
    %v955 = vunpack.c.h.b16 %v323
    %v956 = vunpack.c.l.b16 %v324
    %v957 = vunpack.c.h.b16 %v324
    %v958 = vunpack.c.l.b16 %v325
    %v959 = vunpack.c.h.b16 %v325
    %v960 = vunpack.c.l.b16 %v326
    %v961 = vunpack.c.h.b16 %v326
    %v962 = vunpack.c.l.b16 %v327
    %v963 = vunpack.c.h.b16 %v327
    %v964 = vunpack.c.l.b16 %v328
    %v965 = vunpack.c.h.b16 %v328
    %v966 = vunpack.c.l.b16 %v329
    %v967 = vunpack.c.h.b16 %v329
    %v968 = vunpack.c.l.b16 %v330
    %v969 = vunpack.c.h.b16 %v330
    %v970 = vunpack.c.l.b16 %v331
    %v971 = vunpack.c.h.b16 %v331
    %v972 = vunpack.c.l.b16 %v332
    %v973 = vunpack.c.h.b16 %v332
    %v974 = vunpack.c.l.b16 %v333
    %v975 = vunpack.c.h.b16 %v333
    %v976 = vunpack.c.l.b16 %v334
    %v977 = vunpack.c.h.b16 %v334
    %v978 = vunpack.c.l.b16 %v335
    %v979 = vunpack.c.h.b16 %v335
    %v980 = vunpack.c.l.b16 %v336
    %v981 = vunpack.c.h.b16 %v336
    %v982 = vunpack.c.l.b16 %v337
    %v983 = vunpack.c.h.b16 %v337
    %v984 = vunpack.c.l.b16 %v338
    %v985 = vunpack.c.h.b16 %v338
    %v986 = vunpack.c.l.b16 %v339
    %v987 = vunpack.c.h.b16 %v339
    %v988 = vunpack.c.l.b16 %v340
    %v989 = vunpack.c.h.b16 %v340
    %v990 = vunpack.c.l.b16 %v341
    %v991 = vunpack.c.h.b16 %v341
    %v992 = vunpack.c.l.b16 %v342
    %v993 = vunpack.c.h.b16 %v342
    %v994 = vunpack.c.l.b16 %v343
    %v995 = vunpack.c.h.b16 %v343
    %v996 = vunpack.c.l.b16 %v344
    %v997 = vunpack.c.h.b16 %v344
    %v998 = vunpack.c.l.b16 %v345
    %v999 = vunpack.c.h.b16 %v345
    %v1000 = vunpack.c.l.b16 %v346
    %v1001 = vunpack.c.h.b16 %v346
    %v1002 = vunpack.c.l.b16 %v347
    %v1003 = vunpack.c.h.b16 %v347
    %v1004 = vunpack.c.l.b16 %v348
    %v1005 = vunpack.c.h.b16 %v348
    %v1006 = vunpack.c.l.b16 %v349
    %v1007 = vunpack.c.h.b16 %v349
    %v1008 = vunpack.c.l.b16 %v350
    %v1009 = vunpack.c.h.b16 %v350
    %v1010 = vunpack.c.l.b16 %v351
    %v1011 = vunpack.c.h.b16 %v351
    %v1012 = vunpack.c.l.b16 %v352
    %v1013 = vunpack.c.h.b16 %v352
    %v1014 = vunpack.c.l.b16 %v353
    %v1015 = vunpack.c.h.b16 %v353
    %v1016 = vunpack.c.l.b16 %v354
    %v1017 = vunpack.c.h.b16 %v354
    %v1018 = vunpack.c.l.b16 %v355
    %v1019 = vunpack.c.h.b16 %v355
    %v1020 = vunpack.c.l.b16 %v356
    %v1021 = vunpack.c.h.b16 %v356
    %v1022 = vunpack.c.l.b16 %v357
    %v1023 = vunpack.c.h.b16 %v357
    %v1024 = vunpack.c.l.b16 %v358
    %v1025 = vunpack.c.h.b16 %v358
    %v1026 = vunpack.c.l.b16 %v359
    %v1027 = vunpack.c.h.b16 %v359
    %v1028 = vunpack.c.l.b16 %v360
    %v1029 = vunpack.c.h.b16 %v360
    %v1030 = vunpack.c.l.b16 %v361
    %v1031 = vunpack.c.h.b16 %v361
    %v1032 = vunpack.c.l.b16 %v362
    %v1033 = vunpack.c.h.b16 %v362
    %v1034 = vunpack.c.l.b16 %v363
    %v1035 = vunpack.c.h.b16 %v363
    %v1036 = vunpack.c.l.b16 %v364
    %v1037 = vunpack.c.h.b16 %v364
    %v1038 = vunpack.c.l.b16 %v365
    %v1039 = vunpack.c.h.b16 %v365
    %v1040 = vunpack.c.l.b16 %v366
    %v1041 = vunpack.c.h.b16 %v366
    %v1042 = vunpack.c.l.b16 %v367
    %v1043 = vunpack.c.h.b16 %v367
    %v1044 = vunpack.c.l.b16 %v368
    %v1045 = vunpack.c.h.b16 %v368
    %v1046 = vunpack.c.l.b16 %v369
    %v1047 = vunpack.c.h.b16 %v369
    %v1048 = vunpack.c.l.b16 %v370
    %v1049 = vunpack.c.h.b16 %v370
    %v1050 = vunpack.c.l.b16 %v371
    %v1051 = vunpack.c.h.b16 %v371
    %v1052 = vunpack.c.l.b16 %v372
    %v1053 = vunpack.c.h.b16 %v372
    %v1054 = vunpack.c.l.b16 %v373
    %v1055 = vunpack.c.h.b16 %v373
    %v1056 = vunpack.c.l.b16 %v374
    %v1057 = vunpack.c.h.b16 %v374
    %v1058 = vunpack.c.l.b16 %v375
    %v1059 = vunpack.c.h.b16 %v375
    %v1060 = vunpack.c.l.b16 %v376
    %v1061 = vunpack.c.h.b16 %v376
    %v1062 = vunpack.c.l.b16 %v377
    %v1063 = vunpack.c.h.b16 %v377
    %v1064 = vunpack.c.l.b16 %v378
    %v1065 = vunpack.c.h.b16 %v378
    %v1066 = vunpack.c.l.b16 %v379
    %v1067 = vunpack.c.h.b16 %v379
    %v1068 = vunpack.c.l.b16 %v380
    %v1069 = vunpack.c.h.b16 %v380
    %v1070 = vunpack.c.l.b16 %v381
    %v1071 = vunpack.c.h.b16 %v381
    %v1072 = vunpack.c.l.b16 %v382
    %v1073 = vunpack.c.h.b16 %v382
    %v1074 = vunpack.c.l.b16 %v383
    %v1075 = vunpack.c.h.b16 %v383
    %v1076 = vunpack.c.l.b16 %v384
    %v1077 = vunpack.c.h.b16 %v384
    %v1078 = vunpack.c.l.b16 %v385
    %v1079 = vunpack.c.h.b16 %v385
    %v1080 = vunpack.c.l.b16 %v386
    %v1081 = vunpack.c.h.b16 %v386
    %v1082 = vunpack.c.l.b16 %v387
    %v1083 = vunpack.c.h.b16 %v387
    %v1084 = vunpack.c.l.b16 %v388
    %v1085 = vunpack.c.h.b16 %v388
    %v1086 = vunpack.c.l.b16 %v389
    %v1087 = vunpack.c.h.b16 %v389
    %v1088 = vunpack.c.l.b16 %v390
    %v1089 = vunpack.c.h.b16 %v390
    %v1090 = vunpack.c.l.b16 %v391
    %v1091 = vunpack.c.h.b16 %v391
    %v1092 = vunpack.c.l.b16 %v392
    %v1093 = vunpack.c.h.b16 %v392
    %v1094 = vunpack.c.l.b16 %v393
    %v1095 = vunpack.c.h.b16 %v393
    %v1096 = vunpack.c.l.b16 %v394
    %v1097 = vunpack.c.h.b16 %v394
    %v1098 = vunpack.c.l.b16 %v395
    %v1099 = vunpack.c.h.b16 %v395
    %v1100 = vunpack.c.l.b16 %v396
    %v1101 = vunpack.c.h.b16 %v396
    %v1102 = vunpack.c.l.b16 %v397
    %v1103 = vunpack.c.h.b16 %v397
    %v1104 = vunpack.c.l.b16 %v398
    %v1105 = vunpack.c.h.b16 %v398
    %v1106 = vunpack.c.l.b16 %v399
    %v1107 = vunpack.c.h.b16 %v399
    %v1108 = vunpack.c.l.b16 %v400
    %v1109 = vunpack.c.h.b16 %v400
    %v1110 = vunpack.c.l.b16 %v401
    %v1111 = vunpack.c.h.b16 %v401
    %v1112 = vunpack.c.l.b16 %v402
    %v1113 = vunpack.c.h.b16 %v402
    %v1114 = vunpack.c.l.b16 %v403
    %v1115 = vunpack.c.h.b16 %v403
    %v1116 = vunpack.c.l.b16 %v404
    %v1117 = vunpack.c.h.b16 %v404
    %v1118 = vunpack.c.l.b16 %v405
    %v1119 = vunpack.c.h.b16 %v405
    %v1120 = vunpack.c.l.b16 %v406
    %v1121 = vunpack.c.h.b16 %v406
    %v1122 = vunpack.c.l.b16 %v407
    %v1123 = vunpack.c.h.b16 %v407
    %v1124 = vunpack.c.l.b16 %v408
    %v1125 = vunpack.c.h.b16 %v408
    %v1126 = vunpack.c.l.b16 %v409
    %v1127 = vunpack.c.h.b16 %v409
    %v1128 = vunpack.c.l.b16 %v410
    %v1129 = vunpack.c.h.b16 %v410
    %v1130 = vunpack.c.l.b16 %v411
    %v1131 = vunpack.c.h.b16 %v411
    %v1132 = vunpack.c.l.b16 %v412
    %v1133 = vunpack.c.h.b16 %v412
    %v1134 = vunpack.c.l.b16 %v413
    %v1135 = vunpack.c.h.b16 %v413
    %v1136 = vunpack.c.l.b16 %v414
    %v1137 = vunpack.c.h.b16 %v414
    %v1138 = vunpack.c.l.b16 %v415
    %v1139 = vunpack.c.h.b16 %v415
    %v1140 = vunpack.c.l.b16 %v416
    %v1141 = vunpack.c.h.b16 %v416
    %v1142 = vunpack.c.l.b16 %v417
    %v1143 = vunpack.c.h.b16 %v417
    %v1144 = vunpack.c.l.b16 %v418
    %v1145 = vunpack.c.h.b16 %v418
    %v1146 = vunpack.c.l.b16 %v419
    %v1147 = vunpack.c.h.b16 %v419
    %v1148 = vunpack.c.l.b16 %v420
    %v1149 = vunpack.c.h.b16 %v420
    %v1150 = vunpack.c.l.b16 %v421
    %v1151 = vunpack.c.h.b16 %v421
    %v1152 = vunpack.c.l.b16 %v422
    %v1153 = vunpack.c.h.b16 %v422
    %v1154 = vunpack.c.l.b16 %v423
    %v1155 = vunpack.c.h.b16 %v423
    %v1156 = vunpack.c.l.b16 %v424
    %v1157 = vunpack.c.h.b16 %v424
    %v1158 = vunpack.c.l.b16 %v425
    %v1159 = vunpack.c.h.b16 %v425
    %v1160 = vunpack.c.l.b16 %v426
    %v1161 = vunpack.c.h.b16 %v426
    %v1162 = vunpack.c.l.b16 %v427
    %v1163 = vunpack.c.h.b16 %v427
    %v1164 = vunpack.c.l.b16 %v428
    %v1165 = vunpack.c.h.b16 %v428
    %v1166 = vunpack.c.l.b16 %v429
    %v1167 = vunpack.c.h.b16 %v429
    %v1168 = vunpack.c.l.b16 %v430
    %v1169 = vunpack.c.h.b16 %v430
    %v1170 = vunpack.c.l.b16 %v431
    %v1171 = vunpack.c.h.b16 %v431
    %v1172 = vunpack.c.l.b16 %v432
    %v1173 = vunpack.c.h.b16 %v432
    %v1174 = vunpack.c.l.b16 %v433
    %v1175 = vunpack.c.h.b16 %v433
    %v1176 = vunpack.c.l.b16 %v434
    %v1177 = vunpack.c.h.b16 %v434
    %v1178 = vunpack.c.l.b16 %v435
    %v1179 = vunpack.c.h.b16 %v435
    %v1180 = vunpack.c.l.b16 %v436
    %v1181 = vunpack.c.h.b16 %v436
    %v1182 = vunpack.c.l.b16 %v437
    %v1183 = vunpack.c.h.b16 %v437
    %v1184 = vunpack.c.l.b16 %v438
    %v1185 = vunpack.c.h.b16 %v438
    %v1186 = vunpack.c.l.b16 %v439
    %v1187 = vunpack.c.h.b16 %v439
    %v1188 = vunpack.c.l.b16 %v440
    %v1189 = vunpack.c.h.b16 %v440
    %v1190 = vunpack.c.l.b16 %v441
    %v1191 = vunpack.c.h.b16 %v441
    %v1192 = vunpack.c.l.b16 %v442
    %v1193 = vunpack.c.h.b16 %v442
    %v1194 = vunpack.c.l.b16 %v443
    %v1195 = vunpack.c.h.b16 %v443
    %v1196 = vunpack.c.l.b16 %v444
    %v1197 = vunpack.c.h.b16 %v444
    %v1198 = vunpack.c.l.b16 %v445
    %v1199 = vunpack.c.h.b16 %v445
    %v1200 = vunpack.c.l.b16 %v446
    %v1201 = vunpack.c.h.b16 %v446
    %v1202 = vunpack.c.l.b16 %v447
    %v1203 = vunpack.c.h.b16 %v447
    %v1204 = vunpack.c.l.b16 %v448
    %v1205 = vunpack.c.h.b16 %v448
    %v1206 = vunpack.c.l.b16 %v449
    %v1207 = vunpack.c.h.b16 %v449
    %v1208 = vunpack.c.l.b16 %v450
    %v1209 = vunpack.c.h.b16 %v450
    %v1210 = vunpack.c.l.b16 %v451
    %v1211 = vunpack.c.h.b16 %v451
    %v1212 = vunpack.c.l.b16 %v452
    %v1213 = vunpack.c.h.b16 %v452
    %v1214 = vunpack.c.l.b16 %v453
    %v1215 = vunpack.c.h.b16 %v453
    %v1216 = vunpack.c.l.b16 %v454
    %v1217 = vunpack.c.h.b16 %v454
    %v1218 = vunpack.c.l.b16 %v455
    %v1219 = vunpack.c.h.b16 %v455
    %v1220 = vunpack.c.l.b16 %v456
    %v1221 = vunpack.c.h.b16 %v456
    %v1222 = vunpack.c.l.b16 %v457
    %v1223 = vunpack.c.h.b16 %v457
    %v1224 = vunpack.c.l.b16 %v458
    %v1225 = vunpack.c.h.b16 %v458
    %v1226 = vunpack.c.l.b16 %v459
    %v1227 = vunpack.c.h.b16 %v459
    %v1228 = vunpack.c.l.b16 %v460
    %v1229 = vunpack.c.h.b16 %v460
    %v1230 = vunpack.c.l.b16 %v461
    %v1231 = vunpack.c.h.b16 %v461
    %v1232 = vunpack.c.l.b16 %v462
    %v1233 = vunpack.c.h.b16 %v462
    %v1234 = vunpack.c.l.b16 %v463
    %v1235 = vunpack.c.h.b16 %v463
    %v1236 = vunpack.c.l.b16 %v464
    %v1237 = vunpack.c.h.b16 %v464
    %v1238 = vunpack.c.l.b16 %v465
    %v1239 = vunpack.c.h.b16 %v465
    %v1240 = vunpack.c.l.b16 %v466
    %v1241 = vunpack.c.h.b16 %v466
    %v1242 = vunpack.c.l.b16 %v467
    %v1243 = vunpack.c.h.b16 %v467
    %v1244 = vunpack.c.l.b16 %v468
    %v1245 = vunpack.c.h.b16 %v468
    %v1246 = vunpack.c.l.b16 %v469
    %v1247 = vunpack.c.h.b16 %v469
    %v1248 = vunpack.c.l.b16 %v470
    %v1249 = vunpack.c.h.b16 %v470
    %v1250 = vunpack.c.l.b16 %v471
    %v1251 = vunpack.c.h.b16 %v471
    %v1252 = vunpack.c.l.b16 %v472
    %v1253 = vunpack.c.h.b16 %v472
    %v1254 = vunpack.c.l.b16 %v473
    %v1255 = vunpack.c.h.b16 %v473
    %v1256 = vunpack.c.l.b16 %v474
    %v1257 = vunpack.c.h.b16 %v474
    %v1258 = vunpack.c.l.b16 %v475
    %v1259 = vunpack.c.h.b16 %v475
    %v1260 = vunpack.c.l.b16 %v476
    %v1261 = vunpack.c.h.b16 %v476
    %v1262 = vunpack.c.l.b16 %v477
    %v1263 = vunpack.c.h.b16 %v477
    %v1264 = vunpack.c.l.b16 %v478
    %v1265 = vunpack.c.h.b16 %v478
    %v1266 = vunpack.c.l.b16 %v479
    %v1267 = vunpack.c.h.b16 %v479
    %v1268 = vunpack.c.l.b16 %v480
    %v1269 = vunpack.c.h.b16 %v480
    %v1270 = vunpack.c.l.b16 %v481
    %v1271 = vunpack.c.h.b16 %v481
    %v1272 = vunpack.c.l.b16 %v482
    %v1273 = vunpack.c.h.b16 %v482
    %v1274 = vunpack.c.l.b16 %v483
    %v1275 = vunpack.c.h.b16 %v483
    %v1276 = vunpack.c.l.b16 %v484
    %v1277 = vunpack.c.h.b16 %v484
    %v1278 = vunpack.c.l.b16 %v485
    %v1279 = vunpack.c.h.b16 %v485
    %v1280 = vunpack.c.l.b16 %v486
    %v1281 = vunpack.c.h.b16 %v486
    %v1282 = vunpack.c.l.b16 %v487
    %v1283 = vunpack.c.h.b16 %v487
    %v1284 = vunpack.c.l.b16 %v488
    %v1285 = vunpack.c.h.b16 %v488
    %v1286 = vunpack.c.l.b16 %v489
    %v1287 = vunpack.c.h.b16 %v489
    %v1288 = vunpack.c.l.b16 %v490
    %v1289 = vunpack.c.h.b16 %v490
    %v1290 = vunpack.c.l.b16 %v491
    %v1291 = vunpack.c.h.b16 %v491
    %v1292 = vunpack.c.l.b16 %v492
    %v1293 = vunpack.c.h.b16 %v492
    %v1294 = vunpack.c.l.b16 %v493
    %v1295 = vunpack.c.h.b16 %v493
    %v1296 = vunpack.c.l.b16 %v494
    %v1297 = vunpack.c.h.b16 %v494
    %v1298 = vunpack.c.l.b16 %v495
    %v1299 = vunpack.c.h.b16 %v495
    %v1300 = vunpack.c.l.b16 %v496
    %v1301 = vunpack.c.h.b16 %v496
    %v1302 = vunpack.c.l.b16 %v497
    %v1303 = vunpack.c.h.b16 %v497
    %v1304 = vunpack.c.l.b16 %v498
    %v1305 = vunpack.c.h.b16 %v498
    %v1306 = vunpack.c.l.b16 %v499
    %v1307 = vunpack.c.h.b16 %v499
    %v1308 = vunpack.c.l.b16 %v500
    %v1309 = vunpack.c.h.b16 %v500
    %v1310 = vunpack.c.l.b16 %v501
    %v1311 = vunpack.c.h.b16 %v501
    %v1312 = vpack.c.b16 %v808, %v800
    %v1313 = vpack.c.b16 %v809, %v801
    %v1314 = vpack.c.b16 %v810, %v802
    %v1315 = vpack.c.b16 %v811, %v803
    %v1316 = vpack.c.b16 %v812, %v804
    %v1317 = vpack.c.b16 %v813, %v805
    %v1318 = vpack.c.b16 %v814, %v806
    %v1319 = vpack.c.b16 %v815, %v807
    %v1320 = vpack.c.b16 %v824, %v816
    %v1321 = vpack.c.b16 %v825, %v817
    %v1322 = vpack.c.b16 %v826, %v818
    %v1323 = vpack.c.b16 %v827, %v819
    %v1324 = vpack.c.b16 %v828, %v820
    %v1325 = vpack.c.b16 %v829, %v821
    %v1326 = vpack.c.b16 %v830, %v822
    %v1327 = vpack.c.b16 %v831, %v823
    %v1328 = vpack.c.b16 %v840, %v832
    %v1329 = vpack.c.b16 %v841, %v833
    %v1330 = vpack.c.b16 %v842, %v834
    %v1331 = vpack.c.b16 %v843, %v835
    %v1332 = vpack.c.b16 %v844, %v836
    %v1333 = vpack.c.b16 %v845, %v837
    %v1334 = vpack.c.b16 %v846, %v838
    %v1335 = vpack.c.b16 %v847, %v839
    %v1336 = vpack.c.b16 %v856, %v848
    %v1337 = vpack.c.b16 %v857, %v849
    %v1338 = vpack.c.b16 %v858, %v850
    %v1339 = vpack.c.b16 %v859, %v851
    %v1340 = vpack.c.b16 %v860, %v852
    %v1341 = vpack.c.b16 %v861, %v853
    %v1342 = vpack.c.b16 %v862, %v854
    %v1343 = vpack.c.b16 %v863, %v855
    %v1344 = vpack.c.b16 %v872, %v864
    %v1345 = vpack.c.b16 %v873, %v865
    %v1346 = vpack.c.b16 %v874, %v866
    %v1347 = vpack.c.b16 %v875, %v867
    %v1348 = vpack.c.b16 %v876, %v868
    %v1349 = vpack.c.b16 %v877, %v869
    %v1350 = vpack.c.b16 %v878, %v870
    %v1351 = vpack.c.b16 %v879, %v871
    %v1352 = vpack.c.b16 %v888, %v880
    %v1353 = vpack.c.b16 %v889, %v881
    %v1354 = vpack.c.b16 %v890, %v882
    %v1355 = vpack.c.b16 %v891, %v883
    %v1356 = vpack.c.b16 %v892, %v884
    %v1357 = vpack.c.b16 %v893, %v885
    %v1358 = vpack.c.b16 %v894, %v886
    %v1359 = vpack.c.b16 %v895, %v887
    %v1360 = vpack.c.b16 %v904, %v896
    %v1361 = vpack.c.b16 %v905, %v897
    %v1362 = vpack.c.b16 %v906, %v898
    %v1363 = vpack.c.b16 %v907, %v899
    %v1364 = vpack.c.b16 %v908, %v900
    %v1365 = vpack.c.b16 %v909, %v901
    %v1366 = vpack.c.b16 %v910, %v902
    %v1367 = vpack.c.b16 %v911, %v903
    %v1368 = vpack.c.b16 %v920, %v912
    %v1369 = vpack.c.b16 %v921, %v913
    %v1370 = vpack.c.b16 %v922, %v914
    %v1371 = vpack.c.b16 %v923, %v915
    %v1372 = vpack.c.b16 %v924, %v916
    %v1373 = vpack.c.b16 %v925, %v917
    %v1374 = vpack.c.b16 %v926, %v918
    %v1375 = vpack.c.b16 %v927, %v919
    %v1376 = vpack.c.b16 %v936, %v928
    %v1377 = vpack.c.b16 %v937, %v929
    %v1378 = vpack.c.b16 %v938, %v930
    %v1379 = vpack.c.b16 %v939, %v931
    %v1380 = vpack.c.b16 %v940, %v932
    %v1381 = vpack.c.b16 %v941, %v933
    %v1382 = vpack.c.b16 %v942, %v934
    %v1383 = vpack.c.b16 %v943, %v935
    %v1384 = vpack.c.b16 %v952, %v944
    %v1385 = vpack.c.b16 %v953, %v945
    %v1386 = vpack.c.b16 %v954, %v946
    %v1387 = vpack.c.b16 %v955, %v947
    %v1388 = vpack.c.b16 %v956, %v948
    %v1389 = vpack.c.b16 %v957, %v949
    %v1390 = vpack.c.b16 %v958, %v950
    %v1391 = vpack.c.b16 %v959, %v951
    %v1392 = vpack.c.b16 %v968, %v960
    %v1393 = vpack.c.b16 %v969, %v961
    %v1394 = vpack.c.b16 %v970, %v962
    %v1395 = vpack.c.b16 %v971, %v963
    %v1396 = vpack.c.b16 %v972, %v964
    %v1397 = vpack.c.b16 %v973, %v965
    %v1398 = vpack.c.b16 %v974, %v966
    %v1399 = vpack.c.b16 %v975, %v967
    %v1400 = vpack.c.b16 %v984, %v976
    %v1401 = vpack.c.b16 %v985, %v977
    %v1402 = vpack.c.b16 %v986, %v978
    %v1403 = vpack.c.b16 %v987, %v979
    %v1404 = vpack.c.b16 %v988, %v980
    %v1405 = vpack.c.b16 %v989, %v981
    %v1406 = vpack.c.b16 %v990, %v982
    %v1407 = vpack.c.b16 %v991, %v983
    %v1408 = vpack.c.b16 %v1000, %v992
    %v1409 = vpack.c.b16 %v1001, %v993
    %v1410 = vpack.c.b16 %v1002, %v994
    %v1411 = vpack.c.b16 %v1003, %v995
    %v1412 = vpack.c.b16 %v1004, %v996
    %v1413 = vpack.c.b16 %v1005, %v997
    %v1414 = vpack.c.b16 %v1006, %v998
    %v1415 = vpack.c.b16 %v1007, %v999
    %v1416 = vpack.c.b16 %v1016, %v1008
    %v1417 = vpack.c.b16 %v1017, %v1009
    %v1418 = vpack.c.b16 %v1018, %v1010
    %v1419 = vpack.c.b16 %v1019, %v1011
    %v1420 = vpack.c.b16 %v1020, %v1012
    %v1421 = vpack.c.b16 %v1021, %v1013
    %v1422 = vpack.c.b16 %v1022, %v1014
    %v1423 = vpack.c.b16 %v1023, %v1015
    %v1424 = vpack.c.b16 %v1032, %v1024
    %v1425 = vpack.c.b16 %v1033, %v1025
    %v1426 = vpack.c.b16 %v1034, %v1026
    %v1427 = vpack.c.b16 %v1035, %v1027
    %v1428 = vpack.c.b16 %v1036, %v1028
    %v1429 = vpack.c.b16 %v1037, %v1029
    %v1430 = vpack.c.b16 %v1038, %v1030
    %v1431 = vpack.c.b16 %v1039, %v1031
    %v1432 = vpack.c.b16 %v1048, %v1040
    %v1433 = vpack.c.b16 %v1049, %v1041
    %v1434 = vpack.c.b16 %v1050, %v1042
    %v1435 = vpack.c.b16 %v1051, %v1043
    %v1436 = vpack.c.b16 %v1052, %v1044
    %v1437 = vpack.c.b16 %v1053, %v1045
    %v1438 = vpack.c.b16 %v1054, %v1046
    %v1439 = vpack.c.b16 %v1055, %v1047
    %v1440 = vpack.c.b16 %v1064, %v1056
    %v1441 = vpack.c.b16 %v1065, %v1057
    %v1442 = vpack.c.b16 %v1066, %v1058
    %v1443 = vpack.c.b16 %v1067, %v1059
    %v1444 = vpack.c.b16 %v1068, %v1060
    %v1445 = vpack.c.b16 %v1069, %v1061
    %v1446 = vpack.c.b16 %v1070, %v1062
    %v1447 = vpack.c.b16 %v1071, %v1063
    %v1448 = vpack.c.b16 %v1080, %v1072
    %v1449 = vpack.c.b16 %v1081, %v1073
    %v1450 = vpack.c.b16 %v1082, %v1074
    %v1451 = vpack.c.b16 %v1083, %v1075
    %v1452 = vpack.c.b16 %v1084, %v1076
    %v1453 = vpack.c.b16 %v1085, %v1077
    %v1454 = vpack.c.b16 %v1086, %v1078
    %v1455 = vpack.c.b16 %v1087, %v1079
    %v1456 = vpack.c.b16 %v1096, %v1088
    %v1457 = vpack.c.b16 %v1097, %v1089
    %v1458 = vpack.c.b16 %v1098, %v1090
    %v1459 = vpack.c.b16 %v1099, %v1091
    %v1460 = vpack.c.b16 %v1100, %v1092
    %v1461 = vpack.c.b16 %v1101, %v1093
    %v1462 = vpack.c.b16 %v1102, %v1094
    %v1463 = vpack.c.b16 %v1103, %v1095
    %v1464 = vpack.c.b16 %v1112, %v1104
    %v1465 = vpack.c.b16 %v1113, %v1105
    %v1466 = vpack.c.b16 %v1114, %v1106
    %v1467 = vpack.c.b16 %v1115, %v1107
    %v1468 = vpack.c.b16 %v1116, %v1108
    %v1469 = vpack.c.b16 %v1117, %v1109
    %v1470 = vpack.c.b16 %v1118, %v1110
    %v1471 = vpack.c.b16 %v1119, %v1111
    %v1472 = vpack.c.b16 %v1128, %v1120
    %v1473 = vpack.c.b16 %v1129, %v1121
    %v1474 = vpack.c.b16 %v1130, %v1122
    %v1475 = vpack.c.b16 %v1131, %v1123
    %v1476 = vpack.c.b16 %v1132, %v1124
    %v1477 = vpack.c.b16 %v1133, %v1125
    %v1478 = vpack.c.b16 %v1134, %v1126
    %v1479 = vpack.c.b16 %v1135, %v1127
    %v1480 = vpack.c.b16 %v1144, %v1136
    %v1481 = vpack.c.b16 %v1145, %v1137
    %v1482 = vpack.c.b16 %v1146, %v1138
    %v1483 = vpack.c.b16 %v1147, %v1139
    %v1484 = vpack.c.b16 %v1148, %v1140
    %v1485 = vpack.c.b16 %v1149, %v1141
    %v1486 = vpack.c.b16 %v1150, %v1142
    %v1487 = vpack.c.b16 %v1151, %v1143
    %v1488 = vpack.c.b16 %v1160, %v1152
    %v1489 = vpack.c.b16 %v1161, %v1153
    %v1490 = vpack.c.b16 %v1162, %v1154
    %v1491 = vpack.c.b16 %v1163, %v1155
    %v1492 = vpack.c.b16 %v1164, %v1156
    %v1493 = vpack.c.b16 %v1165, %v1157
    %v1494 = vpack.c.b16 %v1166, %v1158
    %v1495 = vpack.c.b16 %v1167, %v1159
    %v1496 = vpack.c.b16 %v1176, %v1168
    %v1497 = vpack.c.b16 %v1177, %v1169
    %v1498 = vpack.c.b16 %v1178, %v1170
    %v1499 = vpack.c.b16 %v1179, %v1171
    %v1500 = vpack.c.b16 %v1180, %v1172
    %v1501 = vpack.c.b16 %v1181, %v1173
    %v1502 = vpack.c.b16 %v1182, %v1174
    %v1503 = vpack.c.b16 %v1183, %v1175
    %v1504 = vpack.c.b16 %v1192, %v1184
    %v1505 = vpack.c.b16 %v1193, %v1185
    %v1506 = vpack.c.b16 %v1194, %v1186
    %v1507 = vpack.c.b16 %v1195, %v1187
    %v1508 = vpack.c.b16 %v1196, %v1188
    %v1509 = vpack.c.b16 %v1197, %v1189
    %v1510 = vpack.c.b16 %v1198, %v1190
    %v1511 = vpack.c.b16 %v1199, %v1191
    %v1512 = vpack.c.b16 %v1208, %v1200
    %v1513 = vpack.c.b16 %v1209, %v1201
    %v1514 = vpack.c.b16 %v1210, %v1202
    %v1515 = vpack.c.b16 %v1211, %v1203
    %v1516 = vpack.c.b16 %v1212, %v1204
    %v1517 = vpack.c.b16 %v1213, %v1205
    %v1518 = vpack.c.b16 %v1214, %v1206
    %v1519 = vpack.c.b16 %v1215, %v1207
    %v1520 = vpack.c.b16 %v1224, %v1216
    %v1521 = vpack.c.b16 %v1225, %v1217
    %v1522 = vpack.c.b16 %v1226, %v1218
    %v1523 = vpack.c.b16 %v1227, %v1219
    %v1524 = vpack.c.b16 %v1228, %v1220
    %v1525 = vpack.c.b16 %v1229, %v1221
    %v1526 = vpack.c.b16 %v1230, %v1222
    %v1527 = vpack.c.b16 %v1231, %v1223
    %v1528 = vpack.c.b16 %v1240, %v1232
    %v1529 = vpack.c.b16 %v1241, %v1233
    %v1530 = vpack.c.b16 %v1242, %v1234
    %v1531 = vpack.c.b16 %v1243, %v1235
    %v1532 = vpack.c.b16 %v1244, %v1236
    %v1533 = vpack.c.b16 %v1245, %v1237
    %v1534 = vpack.c.b16 %v1246, %v1238
    %v1535 = vpack.c.b16 %v1247, %v1239
    %v1536 = vpack.c.b16 %v1256, %v1248
    %v1537 = vpack.c.b16 %v1257, %v1249
    %v1538 = vpack.c.b16 %v1258, %v1250
    %v1539 = vpack.c.b16 %v1259, %v1251
    %v1540 = vpack.c.b16 %v1260, %v1252
    %v1541 = vpack.c.b16 %v1261, %v1253
    %v1542 = vpack.c.b16 %v1262, %v1254
    %v1543 = vpack.c.b16 %v1263, %v1255
    %v1544 = vpack.c.b16 %v1272, %v1264
    %v1545 = vpack.c.b16 %v1273, %v1265
    %v1546 = vpack.c.b16 %v1274, %v1266
    %v1547 = vpack.c.b16 %v1275, %v1267
    %v1548 = vpack.c.b16 %v1276, %v1268
    %v1549 = vpack.c.b16 %v1277, %v1269
    %v1550 = vpack.c.b16 %v1278, %v1270
    %v1551 = vpack.c.b16 %v1279, %v1271
    %v1552 = vpack.c.b16 %v1288, %v1280
    %v1553 = vpack.c.b16 %v1289, %v1281
    %v1554 = vpack.c.b16 %v1290, %v1282
    %v1555 = vpack.c.b16 %v1291, %v1283
    %v1556 = vpack.c.b16 %v1292, %v1284
    %v1557 = vpack.c.b16 %v1293, %v1285
    %v1558 = vpack.c.b16 %v1294, %v1286
    %v1559 = vpack.c.b16 %v1295, %v1287
    %v1560 = vpack.c.b16 %v1304, %v1296
    %v1561 = vpack.c.b16 %v1305, %v1297
    %v1562 = vpack.c.b16 %v1306, %v1298
    %v1563 = vpack.c.b16 %v1307, %v1299
    %v1564 = vpack.c.b16 %v1308, %v1300
    %v1565 = vpack.c.b16 %v1309, %v1301
    %v1566 = vpack.c.b16 %v1310, %v1302
    %v1567 = vpack.c.b16 %v1311, %v1303
    %1824 = vmatprep.subr.bf16.mxu0 %v1369
    %1825 = vmatpush1.bf16.msra.mxu0 %v1368
    %1826 = vmatprep.subr.bf16.mxu0 %v1361
    %1827 = vmatpush1.bf16.msra.mxu0 %v1360
    %1828 = vmatprep.subr.bf16.mxu0 %v1353
    %1829 = vmatpush1.bf16.msra.mxu0 %v1352
    %1830 = vmatprep.subr.bf16.mxu0 %v1345
    %1831 = vmatpush1.bf16.msra.mxu0 %v1344
    %1832 = vmatprep.subr.bf16.mxu0 %v1337
    %1833 = vmatpush1.bf16.msra.mxu0 %v1336
    %1834 = vmatprep.subr.bf16.mxu0 %v1329
    %1835 = vmatpush1.bf16.msra.mxu0 %v1328
    %1836 = vmatprep.subr.bf16.mxu0 %v1321
    %1837 = vmatpush1.bf16.msra.mxu0 %v1320
    %1838 = vmatprep.subr.bf16.mxu0 %v1313
    %1839 = vmatpush1.bf16.msra.mxu0 %v1312
    %1840 = vmatprep.subr.bf16.mxu0 %v1433
    %1841 = vmatpush2.bf16.msra.mxu0 %v1432
    %1842 = vmatprep.subr.bf16.mxu0 %v1425
    %1843 = vmatpush2.bf16.msra.mxu0 %v1424
    %1844 = vmatprep.subr.bf16.mxu0 %v1417
    %1845 = vmatpush2.bf16.msra.mxu0 %v1416
    %1846 = vmatprep.subr.bf16.mxu0 %v1409
    %1847 = vmatpush2.bf16.msra.mxu0 %v1408
    %1848 = vmatprep.subr.bf16.mxu0 %v1401
    %1849 = vmatpush2.bf16.msra.mxu0 %v1400
    %1850 = vmatprep.subr.bf16.mxu0 %v1393
    %1851 = vmatpush2.bf16.msra.mxu0 %v1392
    %1852 = vmatprep.subr.bf16.mxu0 %v1385
    %1853 = vmatpush2.bf16.msra.mxu0 %v1384
    %1854 = vmatprep.subr.bf16.mxu0 %v1377
    %1855 = vmatpush2.bf16.msra.mxu0 %v1376
    %1856 = vmatprep.mubr.bf16.mxu0 %v243
    %1857 = vmatmul.mubr.bf16.gmra.mxu0 %v242
    %v1858 = vpop.f32.mrf.mxu0
    %v1859 = vadd.f32 %v507, %v1858
    %v1860 = vpop.f32.mrf.mxu0
    %v1861 = vadd.f32 %v511, %v1860
    %v1862 = vpop.f32.mrf.mxu0
    %v1863 = vpop.f32.mrf.mxu0
    %1864 = vdwg.mxu0
    %1865 = vmatprep.subr.bf16.mxu0 %v1497
    %1866 = vmatpush1.bf16.msra.mxu0 %v1496
    %1867 = vmatprep.subr.bf16.mxu0 %v1489
    %1868 = vmatpush1.bf16.msra.mxu0 %v1488
    %1869 = vmatprep.subr.bf16.mxu0 %v1481
    %1870 = vmatpush1.bf16.msra.mxu0 %v1480
    %1871 = vmatprep.subr.bf16.mxu0 %v1473
    %1872 = vmatpush1.bf16.msra.mxu0 %v1472
    %1873 = vmatprep.subr.bf16.mxu0 %v1465
    %1874 = vmatpush1.bf16.msra.mxu0 %v1464
    %1875 = vmatprep.subr.bf16.mxu0 %v1457
    %1876 = vmatpush1.bf16.msra.mxu0 %v1456
    %1877 = vmatprep.subr.bf16.mxu0 %v1449
    %1878 = vmatpush1.bf16.msra.mxu0 %v1448
    %1879 = vmatprep.subr.bf16.mxu0 %v1441
    %1880 = vmatpush1.bf16.msra.mxu0 %v1440
    %1881 = vmatprep.subr.bf16.mxu0 %v1561
    %1882 = vmatpush2.bf16.msra.mxu0 %v1560
    %1883 = vmatprep.subr.bf16.mxu0 %v1553
    %1884 = vmatpush2.bf16.msra.mxu0 %v1552
    %1885 = vmatprep.subr.bf16.mxu0 %v1545
    %1886 = vmatpush2.bf16.msra.mxu0 %v1544
    %1887 = vmatprep.subr.bf16.mxu0 %v1537
    %1888 = vmatpush2.bf16.msra.mxu0 %v1536
    %1889 = vmatprep.subr.bf16.mxu0 %v1529
    %1890 = vmatpush2.bf16.msra.mxu0 %v1528
    %1891 = vmatprep.subr.bf16.mxu0 %v1521
    %1892 = vmatpush2.bf16.msra.mxu0 %v1520
    %1893 = vmatprep.subr.bf16.mxu0 %v1513
    %1894 = vmatpush2.bf16.msra.mxu0 %v1512
    %1895 = vmatprep.subr.bf16.mxu0 %v1505
    %1896 = vmatpush2.bf16.msra.mxu0 %v1504
    %1897 = vmatprep.mubr.bf16.mxu0 %v245
    %1898 = vmatmul.mubr.bf16.gmra.mxu0 %v244
    %v1899 = vpop.f32.mrf.mxu0
    %v1900 = vadd.f32 %v1859, %v1899
    %v1901 = vpop.f32.mrf.mxu0
    %v1902 = vadd.f32 %v1861, %v1901
    %v1903 = vpop.f32.mrf.mxu0
    %v1904 = vpop.f32.mrf.mxu0
    %1905 = vdwg.mxu0
    %1906 = vmatprep.subr.bf16.mxu0 %v1371
    %1907 = vmatpush1.bf16.msra.mxu0 %v1370
    %1908 = vmatprep.subr.bf16.mxu0 %v1363
    %1909 = vmatpush1.bf16.msra.mxu0 %v1362
    %1910 = vmatprep.subr.bf16.mxu0 %v1355
    %1911 = vmatpush1.bf16.msra.mxu0 %v1354
    %1912 = vmatprep.subr.bf16.mxu0 %v1347
    %1913 = vmatpush1.bf16.msra.mxu0 %v1346
    %1914 = vmatprep.subr.bf16.mxu0 %v1339
    %1915 = vmatpush1.bf16.msra.mxu0 %v1338
    %1916 = vmatprep.subr.bf16.mxu0 %v1331
    %1917 = vmatpush1.bf16.msra.mxu0 %v1330
    %1918 = vmatprep.subr.bf16.mxu0 %v1323
    %1919 = vmatpush1.bf16.msra.mxu0 %v1322
    %1920 = vmatprep.subr.bf16.mxu0 %v1315
    %1921 = vmatpush1.bf16.msra.mxu0 %v1314
    %1922 = vmatprep.subr.bf16.mxu0 %v1435
    %1923 = vmatpush2.bf16.msra.mxu0 %v1434
    %1924 = vmatprep.subr.bf16.mxu0 %v1427
    %1925 = vmatpush2.bf16.msra.mxu0 %v1426
    %1926 = vmatprep.subr.bf16.mxu0 %v1419
    %1927 = vmatpush2.bf16.msra.mxu0 %v1418
    %1928 = vmatprep.subr.bf16.mxu0 %v1411
    %1929 = vmatpush2.bf16.msra.mxu0 %v1410
    %1930 = vmatprep.subr.bf16.mxu0 %v1403
    %1931 = vmatpush2.bf16.msra.mxu0 %v1402
    %1932 = vmatprep.subr.bf16.mxu0 %v1395
    %1933 = vmatpush2.bf16.msra.mxu0 %v1394
    %1934 = vmatprep.subr.bf16.mxu0 %v1387
    %1935 = vmatpush2.bf16.msra.mxu0 %v1386
    %1936 = vmatprep.subr.bf16.mxu0 %v1379
    %1937 = vmatpush2.bf16.msra.mxu0 %v1378
    %1938 = vmatprep.mubr.bf16.mxu0 %v243
    %1939 = vmatmul.mubr.bf16.gmra.mxu0 %v242
    %v1940 = vpop.f32.mrf.mxu0
    %v1941 = vadd.f32 %v515, %v1940
    %v1942 = vpop.f32.mrf.mxu0
    %v1943 = vadd.f32 %v519, %v1942
    %v1944 = vpop.f32.mrf.mxu0
    %v1945 = vpop.f32.mrf.mxu0
    %1946 = vdwg.mxu0
    %1947 = vmatprep.subr.bf16.mxu0 %v1499
    %1948 = vmatpush1.bf16.msra.mxu0 %v1498
    %1949 = vmatprep.subr.bf16.mxu0 %v1491
    %1950 = vmatpush1.bf16.msra.mxu0 %v1490
    %1951 = vmatprep.subr.bf16.mxu0 %v1483
    %1952 = vmatpush1.bf16.msra.mxu0 %v1482
    %1953 = vmatprep.subr.bf16.mxu0 %v1475
    %1954 = vmatpush1.bf16.msra.mxu0 %v1474
    %1955 = vmatprep.subr.bf16.mxu0 %v1467
    %1956 = vmatpush1.bf16.msra.mxu0 %v1466
    %1957 = vmatprep.subr.bf16.mxu0 %v1459
    %1958 = vmatpush1.bf16.msra.mxu0 %v1458
    %1959 = vmatprep.subr.bf16.mxu0 %v1451
    %1960 = vmatpush1.bf16.msra.mxu0 %v1450
    %1961 = vmatprep.subr.bf16.mxu0 %v1443
    %1962 = vmatpush1.bf16.msra.mxu0 %v1442
    %1963 = vmatprep.subr.bf16.mxu0 %v1563
    %1964 = vmatpush2.bf16.msra.mxu0 %v1562
    %1965 = vmatprep.subr.bf16.mxu0 %v1555
    %1966 = vmatpush2.bf16.msra.mxu0 %v1554
    %1967 = vmatprep.subr.bf16.mxu0 %v1547
    %1968 = vmatpush2.bf16.msra.mxu0 %v1546
    %1969 = vmatprep.subr.bf16.mxu0 %v1539
    %1970 = vmatpush2.bf16.msra.mxu0 %v1538
    %1971 = vmatprep.subr.bf16.mxu0 %v1531
    %1972 = vmatpush2.bf16.msra.mxu0 %v1530
    %1973 = vmatprep.subr.bf16.mxu0 %v1523
    %1974 = vmatpush2.bf16.msra.mxu0 %v1522
    %1975 = vmatprep.subr.bf16.mxu0 %v1515
    %1976 = vmatpush2.bf16.msra.mxu0 %v1514
    %1977 = vmatprep.subr.bf16.mxu0 %v1507
    %1978 = vmatpush2.bf16.msra.mxu0 %v1506
    %1979 = vmatprep.mubr.bf16.mxu0 %v245
    %1980 = vmatmul.mubr.bf16.gmra.mxu0 %v244
    %v1981 = vpop.f32.mrf.mxu0
    %v1982 = vadd.f32 %v1941, %v1981
    %v1983 = vpop.f32.mrf.mxu0
    %v1984 = vadd.f32 %v1943, %v1983
    %v1985 = vpop.f32.mrf.mxu0
    %v1986 = vpop.f32.mrf.mxu0
    %1987 = vdwg.mxu0
    %1988 = vmatprep.subr.bf16.mxu0 %v1373
    %1989 = vmatpush1.bf16.msra.mxu0 %v1372
    %1990 = vmatprep.subr.bf16.mxu0 %v1365
    %1991 = vmatpush1.bf16.msra.mxu0 %v1364
    %1992 = vmatprep.subr.bf16.mxu0 %v1357
    %1993 = vmatpush1.bf16.msra.mxu0 %v1356
    %1994 = vmatprep.subr.bf16.mxu0 %v1349
    %1995 = vmatpush1.bf16.msra.mxu0 %v1348
    %1996 = vmatprep.subr.bf16.mxu0 %v1341
    %1997 = vmatpush1.bf16.msra.mxu0 %v1340
    %1998 = vmatprep.subr.bf16.mxu0 %v1333
    %1999 = vmatpush1.bf16.msra.mxu0 %v1332
    %2000 = vmatprep.subr.bf16.mxu0 %v1325
    %2001 = vmatpush1.bf16.msra.mxu0 %v1324
    %2002 = vmatprep.subr.bf16.mxu0 %v1317
    %2003 = vmatpush1.bf16.msra.mxu0 %v1316
    %2004 = vmatprep.subr.bf16.mxu0 %v1437
    %2005 = vmatpush2.bf16.msra.mxu0 %v1436
    %2006 = vmatprep.subr.bf16.mxu0 %v1429
    %2007 = vmatpush2.bf16.msra.mxu0 %v1428
    %2008 = vmatprep.subr.bf16.mxu0 %v1421
    %2009 = vmatpush2.bf16.msra.mxu0 %v1420
    %2010 = vmatprep.subr.bf16.mxu0 %v1413
    %2011 = vmatpush2.bf16.msra.mxu0 %v1412
    %2012 = vmatprep.subr.bf16.mxu0 %v1405
    %2013 = vmatpush2.bf16.msra.mxu0 %v1404
    %2014 = vmatprep.subr.bf16.mxu0 %v1397
    %2015 = vmatpush2.bf16.msra.mxu0 %v1396
    %2016 = vmatprep.subr.bf16.mxu0 %v1389
    %2017 = vmatpush2.bf16.msra.mxu0 %v1388
    %2018 = vmatprep.subr.bf16.mxu0 %v1381
    %2019 = vmatpush2.bf16.msra.mxu0 %v1380
    %2020 = vmatprep.mubr.bf16.mxu0 %v243
    %2021 = vmatmul.mubr.bf16.gmra.mxu0 %v242
    %v2022 = vpop.f32.mrf.mxu0
    %v2023 = vadd.f32 %v523, %v2022
    %v2024 = vpop.f32.mrf.mxu0
    %v2025 = vadd.f32 %v527, %v2024
    %v2026 = vpop.f32.mrf.mxu0
    %v2027 = vpop.f32.mrf.mxu0
    %2028 = vdwg.mxu0
    %2029 = vmatprep.subr.bf16.mxu0 %v1501
    %2030 = vmatpush1.bf16.msra.mxu0 %v1500
    %2031 = vmatprep.subr.bf16.mxu0 %v1493
    %2032 = vmatpush1.bf16.msra.mxu0 %v1492
    %2033 = vmatprep.subr.bf16.mxu0 %v1485
    %2034 = vmatpush1.bf16.msra.mxu0 %v1484
    %2035 = vmatprep.subr.bf16.mxu0 %v1477
    %2036 = vmatpush1.bf16.msra.mxu0 %v1476
    %2037 = vmatprep.subr.bf16.mxu0 %v1469
    %2038 = vmatpush1.bf16.msra.mxu0 %v1468
    %2039 = vmatprep.subr.bf16.mxu0 %v1461
    %2040 = vmatpush1.bf16.msra.mxu0 %v1460
    %2041 = vmatprep.subr.bf16.mxu0 %v1453
    %2042 = vmatpush1.bf16.msra.mxu0 %v1452
    %2043 = vmatprep.subr.bf16.mxu0 %v1445
    %2044 = vmatpush1.bf16.msra.mxu0 %v1444
    %2045 = vmatprep.subr.bf16.mxu0 %v1565
    %2046 = vmatpush2.bf16.msra.mxu0 %v1564
    %2047 = vmatprep.subr.bf16.mxu0 %v1557
    %2048 = vmatpush2.bf16.msra.mxu0 %v1556
    %2049 = vmatprep.subr.bf16.mxu0 %v1549
    %2050 = vmatpush2.bf16.msra.mxu0 %v1548
    %2051 = vmatprep.subr.bf16.mxu0 %v1541
    %2052 = vmatpush2.bf16.msra.mxu0 %v1540
    %2053 = vmatprep.subr.bf16.mxu0 %v1533
    %2054 = vmatpush2.bf16.msra.mxu0 %v1532
    %2055 = vmatprep.subr.bf16.mxu0 %v1525
    %2056 = vmatpush2.bf16.msra.mxu0 %v1524
    %2057 = vmatprep.subr.bf16.mxu0 %v1517
    %2058 = vmatpush2.bf16.msra.mxu0 %v1516
    %2059 = vmatprep.subr.bf16.mxu0 %v1509
    %2060 = vmatpush2.bf16.msra.mxu0 %v1508
    %2061 = vmatprep.mubr.bf16.mxu0 %v245
    %2062 = vmatmul.mubr.bf16.gmra.mxu0 %v244
    %v2063 = vpop.f32.mrf.mxu0
    %v2064 = vadd.f32 %v2023, %v2063
    %v2065 = vpop.f32.mrf.mxu0
    %v2066 = vadd.f32 %v2025, %v2065
    %v2067 = vpop.f32.mrf.mxu0
    %v2068 = vpop.f32.mrf.mxu0
    %2069 = vdwg.mxu0
    %2070 = vmatprep.subr.bf16.mxu0 %v1375
    %2071 = vmatpush1.bf16.msra.mxu0 %v1374
    %2072 = vmatprep.subr.bf16.mxu0 %v1367
    %2073 = vmatpush1.bf16.msra.mxu0 %v1366
    %2074 = vmatprep.subr.bf16.mxu0 %v1359
    %2075 = vmatpush1.bf16.msra.mxu0 %v1358
    %2076 = vmatprep.subr.bf16.mxu0 %v1351
    %2077 = vmatpush1.bf16.msra.mxu0 %v1350
    %2078 = vmatprep.subr.bf16.mxu0 %v1343
    %2079 = vmatpush1.bf16.msra.mxu0 %v1342
    %2080 = vmatprep.subr.bf16.mxu0 %v1335
    %2081 = vmatpush1.bf16.msra.mxu0 %v1334
    %2082 = vmatprep.subr.bf16.mxu0 %v1327
    %2083 = vmatpush1.bf16.msra.mxu0 %v1326
    %2084 = vmatprep.subr.bf16.mxu0 %v1319
    %2085 = vmatpush1.bf16.msra.mxu0 %v1318
    %2086 = vmatprep.subr.bf16.mxu0 %v1439
    %2087 = vmatpush2.bf16.msra.mxu0 %v1438
    %2088 = vmatprep.subr.bf16.mxu0 %v1431
    %2089 = vmatpush2.bf16.msra.mxu0 %v1430
    %2090 = vmatprep.subr.bf16.mxu0 %v1423
    %2091 = vmatpush2.bf16.msra.mxu0 %v1422
    %2092 = vmatprep.subr.bf16.mxu0 %v1415
    %2093 = vmatpush2.bf16.msra.mxu0 %v1414
    %2094 = vmatprep.subr.bf16.mxu0 %v1407
    %2095 = vmatpush2.bf16.msra.mxu0 %v1406
    %2096 = vmatprep.subr.bf16.mxu0 %v1399
    %2097 = vmatpush2.bf16.msra.mxu0 %v1398
    %2098 = vmatprep.subr.bf16.mxu0 %v1391
    %2099 = vmatpush2.bf16.msra.mxu0 %v1390
    %2100 = vmatprep.subr.bf16.mxu0 %v1383
    %2101 = vmatpush2.bf16.msra.mxu0 %v1382
    %2102 = vmatprep.mubr.bf16.mxu0 %v243
    %2103 = vmatmul.mubr.bf16.gmra.mxu0 %v242
    %v2104 = vpop.f32.mrf.mxu0
    %v2105 = vadd.f32 %v531, %v2104
    %v2106 = vpop.f32.mrf.mxu0
    %v2107 = vadd.f32 %v535, %v2106
    %v2108 = vpop.f32.mrf.mxu0
    %v2109 = vpop.f32.mrf.mxu0
    %2110 = vdwg.mxu0
    %2111 = vmatprep.subr.bf16.mxu0 %v1503
    %2112 = vmatpush1.bf16.msra.mxu0 %v1502
    %2113 = vmatprep.subr.bf16.mxu0 %v1495
    %2114 = vmatpush1.bf16.msra.mxu0 %v1494
    %2115 = vmatprep.subr.bf16.mxu0 %v1487
    %2116 = vmatpush1.bf16.msra.mxu0 %v1486
    %2117 = vmatprep.subr.bf16.mxu0 %v1479
    %2118 = vmatpush1.bf16.msra.mxu0 %v1478
    %2119 = vmatprep.subr.bf16.mxu0 %v1471
    %2120 = vmatpush1.bf16.msra.mxu0 %v1470
    %2121 = vmatprep.subr.bf16.mxu0 %v1463
    %2122 = vmatpush1.bf16.msra.mxu0 %v1462
    %2123 = vmatprep.subr.bf16.mxu0 %v1455
    %2124 = vmatpush1.bf16.msra.mxu0 %v1454
    %2125 = vmatprep.subr.bf16.mxu0 %v1447
    %2126 = vmatpush1.bf16.msra.mxu0 %v1446
    %2127 = vmatprep.subr.bf16.mxu0 %v1567
    %2128 = vmatpush2.bf16.msra.mxu0 %v1566
    %2129 = vmatprep.subr.bf16.mxu0 %v1559
    %2130 = vmatpush2.bf16.msra.mxu0 %v1558
    %2131 = vmatprep.subr.bf16.mxu0 %v1551
    %2132 = vmatpush2.bf16.msra.mxu0 %v1550
    %2133 = vmatprep.subr.bf16.mxu0 %v1543
    %2134 = vmatpush2.bf16.msra.mxu0 %v1542
    %2135 = vmatprep.subr.bf16.mxu0 %v1535
    %2136 = vmatpush2.bf16.msra.mxu0 %v1534
    %2137 = vmatprep.subr.bf16.mxu0 %v1527
    %2138 = vmatpush2.bf16.msra.mxu0 %v1526
    %2139 = vmatprep.subr.bf16.mxu0 %v1519
    %2140 = vmatpush2.bf16.msra.mxu0 %v1518
    %2141 = vmatprep.subr.bf16.mxu0 %v1511
    %2142 = vmatpush2.bf16.msra.mxu0 %v1510
    %2143 = vmatprep.mubr.bf16.mxu0 %v245
    %2144 = vmatmul.mubr.bf16.gmra.mxu0 %v244
    %v2145 = vpop.f32.mrf.mxu0
    %v2146 = vadd.f32 %v2105, %v2145
    %v2147 = vpop.f32.mrf.mxu0
    %v2148 = vadd.f32 %v2107, %v2147
    %v2149 = vpop.f32.mrf.mxu0
    %v2150 = vpop.f32.mrf.mxu0
    %2151 = vdwg.mxu0
    %v2152 = vmax.f32 %v1900, 0.0
    %v2153 = vmax.f32 %v1902, 0.0
    %v2154 = vmax.f32 %v1982, 0.0
    %v2155 = vmax.f32 %v1984, 0.0
    %v2156 = vmax.f32 %v2064, 0.0
    %v2157 = vmax.f32 %v2066, 0.0
    %v2158 = vmax.f32 %v2146, 0.0
    %v2159 = vmax.f32 %v2148, 0.0
    %v2160 = vpack.c.bf16 %v2152, %v2152
    %v2161 = vpack.c.bf16 %v2153, %v2153
    %v2162 = vpack.c.bf16 %v2154, %v2154
    %v2163 = vpack.c.bf16 %v2155, %v2155
    %v2164 = vpack.c.bf16 %v2156, %v2156
    %v2165 = vpack.c.bf16 %v2157, %v2157
    %v2166 = vpack.c.bf16 %v2158, %v2158
    %v2167 = vpack.c.bf16 %v2159, %v2159
    %v2168 = vld [vmem:[#allocation11] sm:$0xf]
    %v2169 = vld [vmem:[#allocation11 + $0x4] sm:$0xf]
    %v2170 = vld [vmem:[#allocation11 + $0x8] sm:$0xf]
    %v2171 = vld [vmem:[#allocation11 + $0xc] sm:$0xf]
    %v2172 = vld [vmem:[#allocation11 + $0x10] sm:$0xf]
    %v2173 = vld [vmem:[#allocation11 + $0x14] sm:$0xf]
    %v2174 = vld [vmem:[#allocation11 + $0x18] sm:$0xf]
    %v2175 = vld [vmem:[#allocation11 + $0x1c] sm:$0xf]
    %v2176 = vld [vmem:[#allocation11 + $0x20] sm:$0xf]
    %v2177 = vld [vmem:[#allocation11 + $0x24] sm:$0xf]
    %v2178 = vld [vmem:[#allocation11 + $0x28] sm:$0xf]
    %v2179 = vld [vmem:[#allocation11 + $0x2c] sm:$0xf]
    %v2180 = vld [vmem:[#allocation11 + $0x30] sm:$0xf]
    %v2181 = vld [vmem:[#allocation11 + $0x34] sm:$0xf]
    %v2182 = vld [vmem:[#allocation11 + $0x38] sm:$0xf]
    %v2183 = vld [vmem:[#allocation11 + $0x3c] sm:$0xf]
    %v2184 = vld [vmem:[#allocation11 + $0x40] sm:$0xf]
    %v2185 = vld [vmem:[#allocation11 + $0x44] sm:$0xf]
    %v2186 = vld [vmem:[#allocation11 + $0x48] sm:$0xf]
    %v2187 = vld [vmem:[#allocation11 + $0x4c] sm:$0xf]
    %v2188 = vld [vmem:[#allocation11 + $0x50] sm:$0xf]
    %v2189 = vld [vmem:[#allocation11 + $0x54] sm:$0xf]
    %v2190 = vld [vmem:[#allocation11 + $0x58] sm:$0xf]
    %v2191 = vld [vmem:[#allocation11 + $0x5c] sm:$0xf]
    %v2192 = vld [vmem:[#allocation11 + $0x60] sm:$0xf]
    %v2193 = vld [vmem:[#allocation11 + $0x64] sm:$0xf]
    %v2194 = vld [vmem:[#allocation11 + $0x68] sm:$0xf]
    %v2195 = vld [vmem:[#allocation11 + $0x6c] sm:$0xf]
    %v2196 = vld [vmem:[#allocation11 + $0x70] sm:$0xf]
    %v2197 = vld [vmem:[#allocation11 + $0x74] sm:$0xf]
    %v2198 = vld [vmem:[#allocation11 + $0x78] sm:$0xf]
    %v2199 = vld [vmem:[#allocation11 + $0x7c] sm:$0xf]
    %v2200 = vld [vmem:[#allocation11 + $0x80] sm:$0xf]
    %v2201 = vld [vmem:[#allocation11 + $0x84] sm:$0xf]
    %v2202 = vld [vmem:[#allocation11 + $0x88] sm:$0xf]
    %v2203 = vld [vmem:[#allocation11 + $0x8c] sm:$0xf]
    %v2204 = vld [vmem:[#allocation11 + $0x90] sm:$0xf]
    %v2205 = vld [vmem:[#allocation11 + $0x94] sm:$0xf]
    %v2206 = vld [vmem:[#allocation11 + $0x98] sm:$0xf]
    %v2207 = vld [vmem:[#allocation11 + $0x9c] sm:$0xf]
    %v2208 = vld [vmem:[#allocation11 + $0xa0] sm:$0xf]
    %v2209 = vld [vmem:[#allocation11 + $0xa4] sm:$0xf]
    %v2210 = vld [vmem:[#allocation11 + $0xa8] sm:$0xf]
    %v2211 = vld [vmem:[#allocation11 + $0xac] sm:$0xf]
    %v2212 = vld [vmem:[#allocation11 + $0xb0] sm:$0xf]
    %v2213 = vld [vmem:[#allocation11 + $0xb4] sm:$0xf]
    %v2214 = vld [vmem:[#allocation11 + $0xb8] sm:$0xf]
    %v2215 = vld [vmem:[#allocation11 + $0xbc] sm:$0xf]
    %v2216 = vld [vmem:[#allocation11 + $0xc0] sm:$0xf]
    %v2217 = vld [vmem:[#allocation11 + $0xc4] sm:$0xf]
    %v2218 = vld [vmem:[#allocation11 + $0xc8] sm:$0xf]
    %v2219 = vld [vmem:[#allocation11 + $0xcc] sm:$0xf]
    %v2220 = vld [vmem:[#allocation11 + $0xd0] sm:$0xf]
    %v2221 = vld [vmem:[#allocation11 + $0xd4] sm:$0xf]
    %v2222 = vld [vmem:[#allocation11 + $0xd8] sm:$0xf]
    %v2223 = vld [vmem:[#allocation11 + $0xdc] sm:$0xf]
    %v2224 = vld [vmem:[#allocation11 + $0xe0] sm:$0xf]
    %v2225 = vld [vmem:[#allocation11 + $0xe4] sm:$0xf]
    %v2226 = vld [vmem:[#allocation11 + $0xe8] sm:$0xf]
    %v2227 = vld [vmem:[#allocation11 + $0xec] sm:$0xf]
    %v2228 = vld [vmem:[#allocation11 + $0xf0] sm:$0xf]
    %v2229 = vld [vmem:[#allocation11 + $0xf4] sm:$0xf]
    %v2230 = vld [vmem:[#allocation11 + $0xf8] sm:$0xf]
    %v2231 = vld [vmem:[#allocation11 + $0xfc] sm:$0xf]
    %v2232 = vld [vmem:[#allocation11 + $0x100] sm:$0xf]
    %v2233 = vld [vmem:[#allocation11 + $0x104] sm:$0xf]
    %v2234 = vld [vmem:[#allocation11 + $0x108] sm:$0xf]
    %v2235 = vld [vmem:[#allocation11 + $0x10c] sm:$0xf]
    %v2236 = vld [vmem:[#allocation11 + $0x110] sm:$0xf]
    %v2237 = vld [vmem:[#allocation11 + $0x114] sm:$0xf]
    %v2238 = vld [vmem:[#allocation11 + $0x118] sm:$0xf]
    %v2239 = vld [vmem:[#allocation11 + $0x11c] sm:$0xf]
    %v2240 = vld [vmem:[#allocation11 + $0x120] sm:$0xf]
    %v2241 = vld [vmem:[#allocation11 + $0x124] sm:$0xf]
    %v2242 = vld [vmem:[#allocation11 + $0x128] sm:$0xf]
    %v2243 = vld [vmem:[#allocation11 + $0x12c] sm:$0xf]
    %v2244 = vld [vmem:[#allocation11 + $0x130] sm:$0xf]
    %v2245 = vld [vmem:[#allocation11 + $0x134] sm:$0xf]
    %v2246 = vld [vmem:[#allocation11 + $0x138] sm:$0xf]
    %v2247 = vld [vmem:[#allocation11 + $0x13c] sm:$0xf]
    %v2248 = vld [vmem:[#allocation11 + $0x140] sm:$0xf]
    %v2249 = vld [vmem:[#allocation11 + $0x144] sm:$0xf]
    %v2250 = vld [vmem:[#allocation11 + $0x148] sm:$0xf]
    %v2251 = vld [vmem:[#allocation11 + $0x14c] sm:$0xf]
    %v2252 = vld [vmem:[#allocation11 + $0x150] sm:$0xf]
    %v2253 = vld [vmem:[#allocation11 + $0x154] sm:$0xf]
    %v2254 = vld [vmem:[#allocation11 + $0x158] sm:$0xf]
    %v2255 = vld [vmem:[#allocation11 + $0x15c] sm:$0xf]
    %v2256 = vld [vmem:[#allocation11 + $0x160] sm:$0xf]
    %v2257 = vld [vmem:[#allocation11 + $0x164] sm:$0xf]
    %v2258 = vld [vmem:[#allocation11 + $0x168] sm:$0xf]
    %v2259 = vld [vmem:[#allocation11 + $0x16c] sm:$0xf]
    %v2260 = vld [vmem:[#allocation11 + $0x170] sm:$0xf]
    %v2261 = vld [vmem:[#allocation11 + $0x174] sm:$0xf]
    %v2262 = vld [vmem:[#allocation11 + $0x178] sm:$0xf]
    %v2263 = vld [vmem:[#allocation11 + $0x17c] sm:$0xf]
    %v2264 = vld [vmem:[#allocation11 + $0x180] sm:$0xf]
    %v2265 = vld [vmem:[#allocation11 + $0x184] sm:$0xf]
    %v2266 = vld [vmem:[#allocation11 + $0x188] sm:$0xf]
    %v2267 = vld [vmem:[#allocation11 + $0x18c] sm:$0xf]
    %v2268 = vld [vmem:[#allocation11 + $0x190] sm:$0xf]
    %v2269 = vld [vmem:[#allocation11 + $0x194] sm:$0xf]
    %v2270 = vld [vmem:[#allocation11 + $0x198] sm:$0xf]
    %v2271 = vld [vmem:[#allocation11 + $0x19c] sm:$0xf]
    %v2272 = vld [vmem:[#allocation11 + $0x1a0] sm:$0xf]
    %v2273 = vld [vmem:[#allocation11 + $0x1a4] sm:$0xf]
    %v2274 = vld [vmem:[#allocation11 + $0x1a8] sm:$0xf]
    %v2275 = vld [vmem:[#allocation11 + $0x1ac] sm:$0xf]
    %v2276 = vld [vmem:[#allocation11 + $0x1b0] sm:$0xf]
    %v2277 = vld [vmem:[#allocation11 + $0x1b4] sm:$0xf]
    %v2278 = vld [vmem:[#allocation11 + $0x1b8] sm:$0xf]
    %v2279 = vld [vmem:[#allocation11 + $0x1bc] sm:$0xf]
    %v2280 = vld [vmem:[#allocation11 + $0x1c0] sm:$0xf]
    %v2281 = vld [vmem:[#allocation11 + $0x1c4] sm:$0xf]
    %v2282 = vld [vmem:[#allocation11 + $0x1c8] sm:$0xf]
    %v2283 = vld [vmem:[#allocation11 + $0x1cc] sm:$0xf]
    %v2284 = vld [vmem:[#allocation11 + $0x1d0] sm:$0xf]
    %v2285 = vld [vmem:[#allocation11 + $0x1d4] sm:$0xf]
    %v2286 = vld [vmem:[#allocation11 + $0x1d8] sm:$0xf]
    %v2287 = vld [vmem:[#allocation11 + $0x1dc] sm:$0xf]
    %v2288 = vld [vmem:[#allocation11 + $0x1e0] sm:$0xf]
    %v2289 = vld [vmem:[#allocation11 + $0x1e4] sm:$0xf]
    %v2290 = vld [vmem:[#allocation11 + $0x1e8] sm:$0xf]
    %v2291 = vld [vmem:[#allocation11 + $0x1ec] sm:$0xf]
    %v2292 = vld [vmem:[#allocation11 + $0x1f0] sm:$0xf]
    %v2293 = vld [vmem:[#allocation11 + $0x1f4] sm:$0xf]
    %v2294 = vld [vmem:[#allocation11 + $0x1f8] sm:$0xf]
    %v2295 = vld [vmem:[#allocation11 + $0x1fc] sm:$0xf]
    %v2296 = vld [vmem:[%s6] sm:$0x1]
    %v2298 = vlaneseq
    %v2299 = vshrl.u32 %v2298, 7
    %v2300 = vsub.s32 0, %v2299
    %v2301 = vrot.slane %v2296, %v2300
    %v2431 = vunpack.c.l.b16 %v2168
    %v2432 = vunpack.c.l.b16 %v2169
    %v2433 = vunpack.c.l.b16 %v2170
    %v2434 = vunpack.c.l.b16 %v2171
    %v2435 = vunpack.c.l.b16 %v2172
    %v2436 = vunpack.c.l.b16 %v2173
    %v2437 = vunpack.c.l.b16 %v2174
    %v2438 = vunpack.c.l.b16 %v2175
    %v2439 = vunpack.c.l.b16 %v2176
    %v2440 = vunpack.c.l.b16 %v2177
    %v2441 = vunpack.c.l.b16 %v2178
    %v2442 = vunpack.c.l.b16 %v2179
    %v2443 = vunpack.c.l.b16 %v2180
    %v2444 = vunpack.c.l.b16 %v2181
    %v2445 = vunpack.c.l.b16 %v2182
    %v2446 = vunpack.c.l.b16 %v2183
    %v2447 = vunpack.c.l.b16 %v2184
    %v2448 = vunpack.c.l.b16 %v2185
    %v2449 = vunpack.c.l.b16 %v2186
    %v2450 = vunpack.c.l.b16 %v2187
    %v2451 = vunpack.c.l.b16 %v2188
    %v2452 = vunpack.c.l.b16 %v2189
    %v2453 = vunpack.c.l.b16 %v2190
    %v2454 = vunpack.c.l.b16 %v2191
    %v2455 = vunpack.c.l.b16 %v2192
    %v2456 = vunpack.c.l.b16 %v2193
    %v2457 = vunpack.c.l.b16 %v2194
    %v2458 = vunpack.c.l.b16 %v2195
    %v2459 = vunpack.c.l.b16 %v2196
    %v2460 = vunpack.c.l.b16 %v2197
    %v2461 = vunpack.c.l.b16 %v2198
    %v2462 = vunpack.c.l.b16 %v2199
    %v2463 = vunpack.c.l.b16 %v2200
    %v2464 = vunpack.c.l.b16 %v2201
    %v2465 = vunpack.c.l.b16 %v2202
    %v2466 = vunpack.c.l.b16 %v2203
    %v2467 = vunpack.c.l.b16 %v2204
    %v2468 = vunpack.c.l.b16 %v2205
    %v2469 = vunpack.c.l.b16 %v2206
    %v2470 = vunpack.c.l.b16 %v2207
    %v2471 = vunpack.c.l.b16 %v2208
    %v2472 = vunpack.c.l.b16 %v2209
    %v2473 = vunpack.c.l.b16 %v2210
    %v2474 = vunpack.c.l.b16 %v2211
    %v2475 = vunpack.c.l.b16 %v2212
    %v2476 = vunpack.c.l.b16 %v2213
    %v2477 = vunpack.c.l.b16 %v2214
    %v2478 = vunpack.c.l.b16 %v2215
    %v2479 = vunpack.c.l.b16 %v2216
    %v2480 = vunpack.c.l.b16 %v2217
    %v2481 = vunpack.c.l.b16 %v2218
    %v2482 = vunpack.c.l.b16 %v2219
    %v2483 = vunpack.c.l.b16 %v2220
    %v2484 = vunpack.c.l.b16 %v2221
    %v2485 = vunpack.c.l.b16 %v2222
    %v2486 = vunpack.c.l.b16 %v2223
    %v2487 = vunpack.c.l.b16 %v2224
    %v2488 = vunpack.c.l.b16 %v2225
    %v2489 = vunpack.c.l.b16 %v2226
    %v2490 = vunpack.c.l.b16 %v2227
    %v2491 = vunpack.c.l.b16 %v2228
    %v2492 = vunpack.c.l.b16 %v2229
    %v2493 = vunpack.c.l.b16 %v2230
    %v2494 = vunpack.c.l.b16 %v2231
    %v2495 = vunpack.c.l.b16 %v2232
    %v2496 = vunpack.c.l.b16 %v2233
    %v2497 = vunpack.c.l.b16 %v2234
    %v2498 = vunpack.c.l.b16 %v2235
    %v2499 = vunpack.c.l.b16 %v2236
    %v2500 = vunpack.c.l.b16 %v2237
    %v2501 = vunpack.c.l.b16 %v2238
    %v2502 = vunpack.c.l.b16 %v2239
    %v2503 = vunpack.c.l.b16 %v2240
    %v2504 = vunpack.c.l.b16 %v2241
    %v2505 = vunpack.c.l.b16 %v2242
    %v2506 = vunpack.c.l.b16 %v2243
    %v2507 = vunpack.c.l.b16 %v2244
    %v2508 = vunpack.c.l.b16 %v2245
    %v2509 = vunpack.c.l.b16 %v2246
    %v2510 = vunpack.c.l.b16 %v2247
    %v2511 = vunpack.c.l.b16 %v2248
    %v2512 = vunpack.c.l.b16 %v2249
    %v2513 = vunpack.c.l.b16 %v2250
    %v2514 = vunpack.c.l.b16 %v2251
    %v2515 = vunpack.c.l.b16 %v2252
    %v2516 = vunpack.c.l.b16 %v2253
    %v2517 = vunpack.c.l.b16 %v2254
    %v2518 = vunpack.c.l.b16 %v2255
    %v2519 = vunpack.c.l.b16 %v2256
    %v2520 = vunpack.c.l.b16 %v2257
    %v2521 = vunpack.c.l.b16 %v2258
    %v2522 = vunpack.c.l.b16 %v2259
    %v2523 = vunpack.c.l.b16 %v2260
    %v2524 = vunpack.c.l.b16 %v2261
    %v2525 = vunpack.c.l.b16 %v2262
    %v2526 = vunpack.c.l.b16 %v2263
    %v2527 = vunpack.c.l.b16 %v2264
    %v2528 = vunpack.c.l.b16 %v2265
    %v2529 = vunpack.c.l.b16 %v2266
    %v2530 = vunpack.c.l.b16 %v2267
    %v2531 = vunpack.c.l.b16 %v2268
    %v2532 = vunpack.c.l.b16 %v2269
    %v2533 = vunpack.c.l.b16 %v2270
    %v2534 = vunpack.c.l.b16 %v2271
    %v2535 = vunpack.c.l.b16 %v2272
    %v2536 = vunpack.c.l.b16 %v2273
    %v2537 = vunpack.c.l.b16 %v2274
    %v2538 = vunpack.c.l.b16 %v2275
    %v2539 = vunpack.c.l.b16 %v2276
    %v2540 = vunpack.c.l.b16 %v2277
    %v2541 = vunpack.c.l.b16 %v2278
    %v2542 = vunpack.c.l.b16 %v2279
    %v2543 = vunpack.c.l.b16 %v2280
    %v2544 = vunpack.c.l.b16 %v2281
    %v2545 = vunpack.c.l.b16 %v2282
    %v2546 = vunpack.c.l.b16 %v2283
    %v2547 = vunpack.c.l.b16 %v2284
    %v2548 = vunpack.c.l.b16 %v2285
    %v2549 = vunpack.c.l.b16 %v2286
    %v2550 = vunpack.c.l.b16 %v2287
    %v2551 = vunpack.c.l.b16 %v2288
    %v2552 = vunpack.c.l.b16 %v2289
    %v2553 = vunpack.c.l.b16 %v2290
    %v2554 = vunpack.c.l.b16 %v2291
    %v2555 = vunpack.c.l.b16 %v2292
    %v2556 = vunpack.c.l.b16 %v2293
    %v2557 = vunpack.c.l.b16 %v2294
    %v2558 = vunpack.c.l.b16 %v2295
    %v2559 = vpack.c.b16 %v2432, %v2431
    %v2560 = vpack.c.b16 %v2434, %v2433
    %v2561 = vpack.c.b16 %v2436, %v2435
    %v2562 = vpack.c.b16 %v2438, %v2437
    %v2563 = vpack.c.b16 %v2440, %v2439
    %v2564 = vpack.c.b16 %v2442, %v2441
    %v2565 = vpack.c.b16 %v2444, %v2443
    %v2566 = vpack.c.b16 %v2446, %v2445
    %v2567 = vpack.c.b16 %v2448, %v2447
    %v2568 = vpack.c.b16 %v2450, %v2449
    %v2569 = vpack.c.b16 %v2452, %v2451
    %v2570 = vpack.c.b16 %v2454, %v2453
    %v2571 = vpack.c.b16 %v2456, %v2455
    %v2572 = vpack.c.b16 %v2458, %v2457
    %v2573 = vpack.c.b16 %v2460, %v2459
    %v2574 = vpack.c.b16 %v2462, %v2461
    %v2575 = vpack.c.b16 %v2464, %v2463
    %v2576 = vpack.c.b16 %v2466, %v2465
    %v2577 = vpack.c.b16 %v2468, %v2467
    %v2578 = vpack.c.b16 %v2470, %v2469
    %v2579 = vpack.c.b16 %v2472, %v2471
    %v2580 = vpack.c.b16 %v2474, %v2473
    %v2581 = vpack.c.b16 %v2476, %v2475
    %v2582 = vpack.c.b16 %v2478, %v2477
    %v2583 = vpack.c.b16 %v2480, %v2479
    %v2584 = vpack.c.b16 %v2482, %v2481
    %v2585 = vpack.c.b16 %v2484, %v2483
    %v2586 = vpack.c.b16 %v2486, %v2485
    %v2587 = vpack.c.b16 %v2488, %v2487
    %v2588 = vpack.c.b16 %v2490, %v2489
    %v2589 = vpack.c.b16 %v2492, %v2491
    %v2590 = vpack.c.b16 %v2494, %v2493
    %v2591 = vpack.c.b16 %v2496, %v2495
    %v2592 = vpack.c.b16 %v2498, %v2497
    %v2593 = vpack.c.b16 %v2500, %v2499
    %v2594 = vpack.c.b16 %v2502, %v2501
    %v2595 = vpack.c.b16 %v2504, %v2503
    %v2596 = vpack.c.b16 %v2506, %v2505
    %v2597 = vpack.c.b16 %v2508, %v2507
    %v2598 = vpack.c.b16 %v2510, %v2509
    %v2599 = vpack.c.b16 %v2512, %v2511
    %v2600 = vpack.c.b16 %v2514, %v2513
    %v2601 = vpack.c.b16 %v2516, %v2515
    %v2602 = vpack.c.b16 %v2518, %v2517
    %v2603 = vpack.c.b16 %v2520, %v2519
    %v2604 = vpack.c.b16 %v2522, %v2521
    %v2605 = vpack.c.b16 %v2524, %v2523
    %v2606 = vpack.c.b16 %v2526, %v2525
    %v2607 = vpack.c.b16 %v2528, %v2527
    %v2608 = vpack.c.b16 %v2530, %v2529
    %v2609 = vpack.c.b16 %v2532, %v2531
    %v2610 = vpack.c.b16 %v2534, %v2533
    %v2611 = vpack.c.b16 %v2536, %v2535
    %v2612 = vpack.c.b16 %v2538, %v2537
    %v2613 = vpack.c.b16 %v2540, %v2539
    %v2614 = vpack.c.b16 %v2542, %v2541
    %v2615 = vpack.c.b16 %v2544, %v2543
    %v2616 = vpack.c.b16 %v2546, %v2545
    %v2617 = vpack.c.b16 %v2548, %v2547
    %v2618 = vpack.c.b16 %v2550, %v2549
    %v2619 = vpack.c.b16 %v2552, %v2551
    %v2620 = vpack.c.b16 %v2554, %v2553
    %v2621 = vpack.c.b16 %v2556, %v2555
    %v2622 = vpack.c.b16 %v2558, %v2557
    %2687 = vmatprep.subr.bf16.mxu0 0
    %2688 = vmatpush1.bf16.msra.mxu0 %v2566
    %2689 = vmatprep.subr.bf16.mxu0 0
    %2690 = vmatpush1.bf16.msra.mxu0 %v2565
    %2691 = vmatprep.subr.bf16.mxu0 0
    %2692 = vmatpush1.bf16.msra.mxu0 %v2564
    %2693 = vmatprep.subr.bf16.mxu0 0
    %2694 = vmatpush1.bf16.msra.mxu0 %v2563
    %2695 = vmatprep.subr.bf16.mxu0 0
    %2696 = vmatpush1.bf16.msra.mxu0 %v2562
    %2697 = vmatprep.subr.bf16.mxu0 0
    %2698 = vmatpush1.bf16.msra.mxu0 %v2561
    %2699 = vmatprep.subr.bf16.mxu0 0
    %2700 = vmatpush1.bf16.msra.mxu0 %v2560
    %2701 = vmatprep.subr.bf16.mxu0 0
    %2702 = vmatpush1.bf16.msra.mxu0 %v2559
    %2703 = vmatprep.subr.bf16.mxu0 0
    %2704 = vmatpush2.bf16.msra.mxu0 %v2574
    %2705 = vmatprep.subr.bf16.mxu0 0
    %2706 = vmatpush2.bf16.msra.mxu0 %v2573
    %2707 = vmatprep.subr.bf16.mxu0 0
    %2708 = vmatpush2.bf16.msra.mxu0 %v2572
    %2709 = vmatprep.subr.bf16.mxu0 0
    %2710 = vmatpush2.bf16.msra.mxu0 %v2571
    %2711 = vmatprep.subr.bf16.mxu0 0
    %2712 = vmatpush2.bf16.msra.mxu0 %v2570
    %2713 = vmatprep.subr.bf16.mxu0 0
    %2714 = vmatpush2.bf16.msra.mxu0 %v2569
    %2715 = vmatprep.subr.bf16.mxu0 0
    %2716 = vmatpush2.bf16.msra.mxu0 %v2568
    %2717 = vmatprep.subr.bf16.mxu0 0
    %2718 = vmatpush2.bf16.msra.mxu0 %v2567
    %2719 = vmatprep.mubr.bf16.mxu0 %v2161
    %2720 = vmatmul.mubr.bf16.gmra.mxu0 %v2160
    %v2721 = vpop.f32.mrf.mxu0
    %v2722 = vadd.f32 %v2301, %v2721
    %v2723 = vpop.f32.mrf.mxu0
    %v2724 = vpop.f32.mrf.mxu0
    %v2725 = vpop.f32.mrf.mxu0
    %2726 = vdwg.mxu0
    %2727 = vmatprep.subr.bf16.mxu0 0
    %2728 = vmatpush1.bf16.msra.mxu0 %v2582
    %2729 = vmatprep.subr.bf16.mxu0 0
    %2730 = vmatpush1.bf16.msra.mxu0 %v2581
    %2731 = vmatprep.subr.bf16.mxu0 0
    %2732 = vmatpush1.bf16.msra.mxu0 %v2580
    %2733 = vmatprep.subr.bf16.mxu0 0
    %2734 = vmatpush1.bf16.msra.mxu0 %v2579
    %2735 = vmatprep.subr.bf16.mxu0 0
    %2736 = vmatpush1.bf16.msra.mxu0 %v2578
    %2737 = vmatprep.subr.bf16.mxu0 0
    %2738 = vmatpush1.bf16.msra.mxu0 %v2577
    %2739 = vmatprep.subr.bf16.mxu0 0
    %2740 = vmatpush1.bf16.msra.mxu0 %v2576
    %2741 = vmatprep.subr.bf16.mxu0 0
    %2742 = vmatpush1.bf16.msra.mxu0 %v2575
    %2743 = vmatprep.subr.bf16.mxu0 0
    %2744 = vmatpush2.bf16.msra.mxu0 %v2590
    %2745 = vmatprep.subr.bf16.mxu0 0
    %2746 = vmatpush2.bf16.msra.mxu0 %v2589
    %2747 = vmatprep.subr.bf16.mxu0 0
    %2748 = vmatpush2.bf16.msra.mxu0 %v2588
    %2749 = vmatprep.subr.bf16.mxu0 0
    %2750 = vmatpush2.bf16.msra.mxu0 %v2587
    %2751 = vmatprep.subr.bf16.mxu0 0
    %2752 = vmatpush2.bf16.msra.mxu0 %v2586
    %2753 = vmatprep.subr.bf16.mxu0 0
    %2754 = vmatpush2.bf16.msra.mxu0 %v2585
    %2755 = vmatprep.subr.bf16.mxu0 0
    %2756 = vmatpush2.bf16.msra.mxu0 %v2584
    %2757 = vmatprep.subr.bf16.mxu0 0
    %2758 = vmatpush2.bf16.msra.mxu0 %v2583
    %2759 = vmatprep.mubr.bf16.mxu0 %v2163
    %2760 = vmatmul.mubr.bf16.gmra.mxu0 %v2162
    %v2761 = vpop.f32.mrf.mxu0
    %v2762 = vadd.f32 %v2722, %v2761
    %v2763 = vpop.f32.mrf.mxu0
    %v2764 = vpop.f32.mrf.mxu0
    %v2765 = vpop.f32.mrf.mxu0
    %2766 = vdwg.mxu0
    %2767 = vmatprep.subr.bf16.mxu0 0
    %2768 = vmatpush1.bf16.msra.mxu0 %v2598
    %2769 = vmatprep.subr.bf16.mxu0 0
    %2770 = vmatpush1.bf16.msra.mxu0 %v2597
    %2771 = vmatprep.subr.bf16.mxu0 0
    %2772 = vmatpush1.bf16.msra.mxu0 %v2596
    %2773 = vmatprep.subr.bf16.mxu0 0
    %2774 = vmatpush1.bf16.msra.mxu0 %v2595
    %2775 = vmatprep.subr.bf16.mxu0 0
    %2776 = vmatpush1.bf16.msra.mxu0 %v2594
    %2777 = vmatprep.subr.bf16.mxu0 0
    %2778 = vmatpush1.bf16.msra.mxu0 %v2593
    %2779 = vmatprep.subr.bf16.mxu0 0
    %2780 = vmatpush1.bf16.msra.mxu0 %v2592
    %2781 = vmatprep.subr.bf16.mxu0 0
    %2782 = vmatpush1.bf16.msra.mxu0 %v2591
    %2783 = vmatprep.subr.bf16.mxu0 0
    %2784 = vmatpush2.bf16.msra.mxu0 %v2606
    %2785 = vmatprep.subr.bf16.mxu0 0
    %2786 = vmatpush2.bf16.msra.mxu0 %v2605
    %2787 = vmatprep.subr.bf16.mxu0 0
    %2788 = vmatpush2.bf16.msra.mxu0 %v2604
    %2789 = vmatprep.subr.bf16.mxu0 0
    %2790 = vmatpush2.bf16.msra.mxu0 %v2603
    %2791 = vmatprep.subr.bf16.mxu0 0
    %2792 = vmatpush2.bf16.msra.mxu0 %v2602
    %2793 = vmatprep.subr.bf16.mxu0 0
    %2794 = vmatpush2.bf16.msra.mxu0 %v2601
    %2795 = vmatprep.subr.bf16.mxu0 0
    %2796 = vmatpush2.bf16.msra.mxu0 %v2600
    %2797 = vmatprep.subr.bf16.mxu0 0
    %2798 = vmatpush2.bf16.msra.mxu0 %v2599
    %2799 = vmatprep.mubr.bf16.mxu0 %v2165
    %2800 = vmatmul.mubr.bf16.gmra.mxu0 %v2164
    %v2801 = vpop.f32.mrf.mxu0
    %v2802 = vadd.f32 %v2762, %v2801
    %v2803 = vpop.f32.mrf.mxu0
    %v2804 = vpop.f32.mrf.mxu0
    %v2805 = vpop.f32.mrf.mxu0
    %2806 = vdwg.mxu0
    %2807 = vmatprep.subr.bf16.mxu0 0
    %2808 = vmatpush1.bf16.msra.mxu0 %v2614
    %2809 = vmatprep.subr.bf16.mxu0 0
    %2810 = vmatpush1.bf16.msra.mxu0 %v2613
    %2811 = vmatprep.subr.bf16.mxu0 0
    %2812 = vmatpush1.bf16.msra.mxu0 %v2612
    %2813 = vmatprep.subr.bf16.mxu0 0
    %2814 = vmatpush1.bf16.msra.mxu0 %v2611
    %2815 = vmatprep.subr.bf16.mxu0 0
    %2816 = vmatpush1.bf16.msra.mxu0 %v2610
    %2817 = vmatprep.subr.bf16.mxu0 0
    %2818 = vmatpush1.bf16.msra.mxu0 %v2609
    %2819 = vmatprep.subr.bf16.mxu0 0
    %2820 = vmatpush1.bf16.msra.mxu0 %v2608
    %2821 = vmatprep.subr.bf16.mxu0 0
    %2822 = vmatpush1.bf16.msra.mxu0 %v2607
    %2823 = vmatprep.subr.bf16.mxu0 0
    %2824 = vmatpush2.bf16.msra.mxu0 %v2622
    %2825 = vmatprep.subr.bf16.mxu0 0
    %2826 = vmatpush2.bf16.msra.mxu0 %v2621
    %2827 = vmatprep.subr.bf16.mxu0 0
    %2828 = vmatpush2.bf16.msra.mxu0 %v2620
    %2829 = vmatprep.subr.bf16.mxu0 0
    %2830 = vmatpush2.bf16.msra.mxu0 %v2619
    %2831 = vmatprep.subr.bf16.mxu0 0
    %2832 = vmatpush2.bf16.msra.mxu0 %v2618
    %2833 = vmatprep.subr.bf16.mxu0 0
    %2834 = vmatpush2.bf16.msra.mxu0 %v2617
    %2835 = vmatprep.subr.bf16.mxu0 0
    %2836 = vmatpush2.bf16.msra.mxu0 %v2616
    %2837 = vmatprep.subr.bf16.mxu0 0
    %2838 = vmatpush2.bf16.msra.mxu0 %v2615
    %2839 = vmatprep.mubr.bf16.mxu0 %v2167
    %2840 = vmatmul.mubr.bf16.gmra.mxu0 %v2166
    %v2841 = vpop.f32.mrf.mxu0
    %v2842 = vadd.f32 %v2802, %v2841
    %v2843 = vpop.f32.mrf.mxu0
    %v2844 = vpop.f32.mrf.mxu0
    %v2845 = vpop.f32.mrf.mxu0
    %2846 = vdwg.mxu0
    %2847 = vst [vmem:[#allocation13] sm:$0xff] %v2842
    // Predicated region
    $region54: #{tpu_custom_call.1} parent=1 // pred_check
      _
    $region55: #{tpu_custom_call.1} parent=1 // pred_check_branch
      %2849 = sbr.rel (0) target = $region57
    $region56: #{tpu_custom_call.1} parent=1 // pred_region
      %s2851 = ssub.s32 128, 128
      %2852 = vsyncadd [#allocation4], %s2851
      %s2854 = sshll.u32 [#allocation13], 4
      %s2855 = int_to_ptr.vmem [resolvable:$true] %s2854
      %2857 = dma.vmem_to_hbm [thread:$0]  %s2855, 128, %s7, [#allocation4]
    $region57: #{tpu_custom_call.1} parent=1 // pred_fallthru
      _
    // Predicated region
    $region58: #{tpu_custom_call.1} parent=1 // pred_check
      _
    $region59: #{tpu_custom_call.1} parent=1 // pred_check_branch
      %2859 = sbr.rel (0) target = $region61
    $region60: #{tpu_custom_call.1} parent=1 // pred_region
      %2860 = dma.done [#allocation4], 128
    $region61: #{tpu_custom_call.1} parent=1 // pred_fallthru
      _
    %2861 = vsyncpa [#allocation3], 1
    %2862 = vsyncpa [#allocation6], 1
    %2863 = vsyncpa [#allocation9], 1
    %2864 = vsyncpa [#allocation12], 1
    %2865 = vsyncpa [#allocation4], 1

</llo_original>
